<compile_context>
chip_gen: v5e
topology: v5e:2x2
jax: 0.10.0
libtpu: 0.0.40
codegen_flags: <defaults>
</compile_context>

<pallas_src>
import jax
import jax.numpy as jnp
from jax.experimental import pallas as pl
from jax.experimental.pallas import tpu as pltpu

LANE = 128
IN_FEATURES = 3 * 28 * 28  # 2352
HIDDEN = 100


def _round_up(x, m):
    return (x + m - 1) // m * m


def mlp_kernel(x_ref, w1_ref, b1_ref, w2_ref, b2_ref, w3_ref, b3_ref,
               w4_ref, out_ref):
    # x.view(B, -1); the /255 is folded into w1 at pack time, so the only
    # per-pixel VPU work left is the cast to bf16 (exact for uint8 pixels).
    x = x_ref[...].astype(jnp.float32).astype(jnp.bfloat16)

    # feature: Linear -> ReLU (x3); bias add + ReLU in f32, matmuls in bf16
    # with f32 accumulation on the MXU.
    h = jnp.dot(x, w1_ref[...], preferred_element_type=jnp.float32)
    h = jnp.maximum(h + b1_ref[...], 0.0).astype(jnp.bfloat16)

    h = jnp.dot(h, w2_ref[...], preferred_element_type=jnp.float32)
    h = jnp.maximum(h + b2_ref[...], 0.0).astype(jnp.bfloat16)

    h = jnp.dot(h, w3_ref[...], preferred_element_type=jnp.float32)
    h = jnp.maximum(h + b3_ref[...], 0.0).astype(jnp.bfloat16)

    # classifier: Linear (no bias).  Padded columns of w4 are zero, so the
    # extra logit lanes are exactly 0 and get sliced away in the wrapper.
    # bf16 store halves the output writeback DMA.
    out_ref[...] = jnp.dot(
        h, w4_ref[...], preferred_element_type=jnp.float32
    ).astype(jnp.bfloat16)


def pack_params(params):
    """Pad feature dims to 128 lanes; fold 1/255 into w1; weights -> bf16,
    biases stay f32 with shape (1, 128)."""
    w1, b1, w2, b2, w3, b3, w4 = params

    def pad_to(a, shape):
        return jnp.pad(a, [(0, s - d) for d, s in zip(a.shape, shape)])

    H = _round_up(HIDDEN, LANE)                 # 128
    C = _round_up(w4.shape[1], LANE)            # 128
    w1p = pad_to(w1 * (1.0 / 255.0), (IN_FEATURES, H)).astype(jnp.bfloat16)
    w2p = pad_to(w2, (H, H)).astype(jnp.bfloat16)
    w3p = pad_to(w3, (H, H)).astype(jnp.bfloat16)
    w4p = pad_to(w4, (H, C)).astype(jnp.bfloat16)
    b1p = pad_to(b1, (1, H)).astype(jnp.float32)
    b2p = pad_to(b2, (1, H)).astype(jnp.float32)
    b3p = pad_to(b3, (1, H)).astype(jnp.float32)
    return (w1p, b1p, w2p, b2p, w3p, b3p, w4p)


def _auto_block_b(in_itemsize):
    """Batch-tile rows such that everything that must coexist in VMEM
    (double-buffered input tile, in-kernel f32/bf16 copies of that tile,
    ~1.4 MiB double-buffered resident weights, small output buffers) fits
    inside v5e's 16 MiB scoped-VMEM default.  Generation-agnostic & safe;
    on v6e/v7x callers may pass a larger block_b explicitly."""
    per_row = IN_FEATURES * (2 * in_itemsize + 4 + 2)
    rows = (12 * 1024 * 1024) // per_row
    return max(32, (rows // 32) * 32)


def mlp_forward(x, packed_params, num_classes, *, block_b=None,
                vmem_limit_bytes=None):
    """x: (B, 3, 28, 28) uint8 (preferred) or float pixels in [0, 255].
    Returns logits (B, num_classes) in f32."""
    w1, b1, w2, b2, w3, b3, w4 = packed_params
    B = x.shape[0]
    x_flat = x.reshape(B, -1)                    # == torch .view(B, -1)
    assert x_flat.shape[1] == IN_FEATURES

    itemsize = jnp.dtype(x_flat.dtype).itemsize
    tb = block_b if block_b is not None else _auto_block_b(itemsize)
    # Enforce the (8,128) tiling rule regardless of caller input: TB must be a
    # multiple of 32 (uint8 native tile rows; also covers bf16's 16-row pack).
    tb = max(32, (min(tb, _round_up(B, 32)) // 32) * 32)

    B_pad = _round_up(B, tb)
    if B_pad != B:
        x_flat = jnp.pad(x_flat, ((0, B_pad - B), (0, 0)))
    nb = B_pad // tb
    C = w4.shape[1]                              # lane-padded num_classes (128)

    # Weights / biases: whole-array blocks with a constant index_map -> DMA'd
    # once, VMEM-resident across all batch tiles.
    # TODO(synk): on v7x, pipeline_mode=pl.Buffered(1) on these specs would
    # drop the redundant second weight buffer (~0.7 MiB of headroom).
    resident = lambda a: pl.BlockSpec(a.shape, lambda i: (0,) * a.ndim)

    compiler_params = pltpu.CompilerParams(
        dimension_semantics=("parallel",),        # v7x megacore; no-op v5e/v6e
        vmem_limit_bytes=vmem_limit_bytes,
    )

    out = pl.pallas_call(
        mlp_kernel,
        out_shape=jax.ShapeDtypeStruct((B_pad, C), jnp.bfloat16),
        grid_spec=pltpu.PrefetchScalarGridSpec(
            num_scalar_prefetch=0,
            grid=(nb,),
            in_specs=[pl.BlockSpec((tb, IN_FEATURES), lambda i: (i, 0)),
                      resident(w1), resident(b1),
                      resident(w2), resident(b2),
                      resident(w3), resident(b3),
                      resident(w4)],
            out_specs=pl.BlockSpec((tb, C), lambda i: (i, 0)),
        ),
        compiler_params=compiler_params,
    )(x_flat, w1, b1, w2, b2, w3, b3, w4)

    return out[:B, :num_classes].astype(jnp.float32)


def init_params(key, num_classes=10):
    """Deterministic init mimicking torch.nn.Linear default (U[-k, k],
    k=1/sqrt(fan_in)).  Weights stored as (in_features, out_features), f32."""
    dims = [(IN_FEATURES, HIDDEN), (HIDDEN, HIDDEN), (HIDDEN, HIDDEN)]
    keys = jax.random.split(key, 7)
    params = []
    ki = 0
    for (fan_in, fan_out) in dims:
        bound = 1.0 / jnp.sqrt(fan_in)
        w = jax.random.uniform(keys[ki], (fan_in, fan_out), jnp.float32,
                               minval=-bound, maxval=bound)
        b = jax.random.uniform(keys[ki + 1], (fan_out,), jnp.float32,
                               minval=-bound, maxval=bound).reshape(1, fan_out)
        params += [w, b]
        ki += 2
    bound = 1.0 / jnp.sqrt(HIDDEN)
    w4 = jax.random.uniform(keys[ki], (HIDDEN, num_classes), jnp.float32,
                            minval=-bound, maxval=bound)
    params.append(w4)
    return tuple(params)


def reference_forward_f32(x, params):
    """Pure-JAX f32 reference (matches the PyTorch module numerically)."""
    w1, b1, w2, b2, w3, b3, w4 = params
    h = x.reshape(x.shape[0], -1).astype(jnp.float32) / 255.0
    h = jnp.maximum(h @ w1 + b1, 0.0)
    h = jnp.maximum(h @ w2 + b2, 0.0)
    h = jnp.maximum(h @ w3 + b3, 0.0)
    return h @ w4


def reference_forward_packed(x, packed_params, num_classes):
    """Pure-JAX reference using the same packed bf16 params as the kernel."""
    w1, b1, w2, b2, w3, b3, w4 = packed_params
    h = x.reshape(x.shape[0], -1).astype(jnp.float32).astype(jnp.bfloat16)
    h = jnp.maximum(jnp.dot(h, w1, preferred_element_type=jnp.float32) + b1, 0.0)
    h = jnp.maximum(jnp.dot(h.astype(jnp.bfloat16), w2,
                            preferred_element_type=jnp.float32) + b2, 0.0)
    h = jnp.maximum(jnp.dot(h.astype(jnp.bfloat16), w3,
                            preferred_element_type=jnp.float32) + b3, 0.0)
    out = jnp.dot(h.astype(jnp.bfloat16), w4,
                  preferred_element_type=jnp.float32)
    return out[:, :num_classes]


if __name__ == "__main__":
    key = jax.random.PRNGKey(0)
    pkey, xkey = jax.random.split(key)

    num_classes = 10
    params = init_params(pkey, num_classes=num_classes)
    packed = pack_params(params)

    # Pixel inputs as uint8 (the preferred, DMA-cheap path), NCHW layout.
    x_u8 = jax.random.randint(xkey, (2, 3, 28, 28), 0, 256).astype(jnp.uint8)

    out = jax.block_until_ready(mlp_forward(x_u8, packed, num_classes))
    assert out.shape == (2, num_classes)

    # Closeness vs an equivalent bf16 JAX computation (same packed params).
    ref_bf16 = reference_forward_packed(x_u8, packed, num_classes)
    assert jnp.allclose(out, ref_bf16, atol=1e-2, rtol=1e-2), \
        "mismatch vs bf16 reference"

    # Semantic check vs the full-f32 PyTorch-equivalent forward (looser tol:
    # the kernel runs the matmuls in bf16 with f32 accumulation and the /255
    # is folded into bf16 w1).
    ref_f32 = reference_forward_f32(x_u8, params)
    assert jnp.allclose(out, ref_f32, atol=5e-2, rtol=5e-2), \
        "mismatch vs f32 reference"

    # The f32-pixel path still works and agrees with the uint8 path.
    out_f32in = jax.block_until_ready(
        mlp_forward(x_u8.astype(jnp.float32), packed, num_classes))
    assert jnp.allclose(out_f32in, out, atol=1e-2, rtol=1e-2), \
        "uint8 vs f32 input path mismatch"

    print("KERNEL_OK")
</pallas_src>

<mosaic_0001>
module attributes {stable_mosaic.version = 11 : i64} {
  func.func @mlp_kernel(%arg0: i32, %arg1: memref<32x2352xi8, #tpu.memory_space<vmem>>, %arg2: memref<2352x128xbf16, #tpu.memory_space<vmem>>, %arg3: memref<1x128xf32, #tpu.memory_space<vmem>>, %arg4: memref<128x128xbf16, #tpu.memory_space<vmem>>, %arg5: memref<1x128xf32, #tpu.memory_space<vmem>>, %arg6: memref<128x128xbf16, #tpu.memory_space<vmem>>, %arg7: memref<1x128xf32, #tpu.memory_space<vmem>>, %arg8: memref<128x128xbf16, #tpu.memory_space<vmem>>, %arg9: memref<32x128xbf16, #tpu.memory_space<vmem>>) attributes {dimension_semantics = [#tpu.dimension_semantics<parallel>], iteration_bounds = array<i64: 1>, scalar_prefetch = 0 : i64, scratch_operands = 0 : i64, tpu.core_type = #tpu.core_type<tc>, window_params = [{transform_indices = @transform_0, window_bounds = array<i64: 32, 2352>}, {pipeline_mode = #tpu.pipeline_mode<synchronous>, transform_indices = @transform_1, window_bounds = array<i64: 2352, 128>}, {pipeline_mode = #tpu.pipeline_mode<synchronous>, transform_indices = @transform_2, window_bounds = array<i64: 1, 128>}, {pipeline_mode = #tpu.pipeline_mode<synchronous>, transform_indices = @transform_3, window_bounds = array<i64: 128, 128>}, {pipeline_mode = #tpu.pipeline_mode<synchronous>, transform_indices = @transform_4, window_bounds = array<i64: 1, 128>}, {pipeline_mode = #tpu.pipeline_mode<synchronous>, transform_indices = @transform_5, window_bounds = array<i64: 128, 128>}, {pipeline_mode = #tpu.pipeline_mode<synchronous>, transform_indices = @transform_6, window_bounds = array<i64: 1, 128>}, {pipeline_mode = #tpu.pipeline_mode<synchronous>, transform_indices = @transform_7, window_bounds = array<i64: 128, 128>}, {transform_indices = @transform_8, window_bounds = array<i64: 32, 128>}]} {
    %c0 = arith.constant 0 : index
    %c0_0 = arith.constant 0 : index
    %0 = vector.load %arg1[%c0, %c0_0] : memref<32x2352xi8, #tpu.memory_space<vmem>>, vector<32x2352xi8>
    %1 = arith.uitofp %0 : vector<32x2352xi8> to vector<32x2352xf32>
    %2 = arith.truncf %1 : vector<32x2352xf32> to vector<32x2352xbf16>
    %c0_1 = arith.constant 0 : index
    %c0_2 = arith.constant 0 : index
    %3 = vector.load %arg2[%c0_1, %c0_2] : memref<2352x128xbf16, #tpu.memory_space<vmem>>, vector<2352x128xbf16>
    %cst = arith.constant dense<0.000000e+00> : vector<32x128xf32>
    %4 = tpu.matmul %2, %3, %cst {dimension_numbers = #tpu.dot_dimension_numbers<[1], [0], [0], [1], [0, 0, 1, 1], [], []>} : vector<32x2352xbf16>, vector<2352x128xbf16>, vector<32x128xf32> -> vector<32x128xf32>
    %c0_3 = arith.constant 0 : index
    %c0_4 = arith.constant 0 : index
    %5 = vector.load %arg3[%c0_3, %c0_4] : memref<1x128xf32, #tpu.memory_space<vmem>>, vector<1x128xf32>
    %6 = vector.broadcast %5 : vector<1x128xf32> to vector<32x128xf32>
    %7 = arith.addf %4, %6 : vector<32x128xf32>
    %cst_5 = arith.constant 0.000000e+00 : f32
    %8 = vector.broadcast %cst_5 : f32 to vector<32x128xf32>
    %9 = arith.maximumf %7, %8 : vector<32x128xf32>
    %10 = arith.truncf %9 : vector<32x128xf32> to vector<32x128xbf16>
    %c0_6 = arith.constant 0 : index
    %c0_7 = arith.constant 0 : index
    %11 = vector.load %arg4[%c0_6, %c0_7] : memref<128x128xbf16, #tpu.memory_space<vmem>>, vector<128x128xbf16>
    %cst_8 = arith.constant dense<0.000000e+00> : vector<32x128xf32>
    %12 = tpu.matmul %10, %11, %cst_8 {dimension_numbers = #tpu.dot_dimension_numbers<[1], [0], [0], [1], [0, 0, 1, 1], [], []>} : vector<32x128xbf16>, vector<128x128xbf16>, vector<32x128xf32> -> vector<32x128xf32>
    %c0_9 = arith.constant 0 : index
    %c0_10 = arith.constant 0 : index
    %13 = vector.load %arg5[%c0_9, %c0_10] : memref<1x128xf32, #tpu.memory_space<vmem>>, vector<1x128xf32>
    %14 = vector.broadcast %13 : vector<1x128xf32> to vector<32x128xf32>
    %15 = arith.addf %12, %14 : vector<32x128xf32>
    %cst_11 = arith.constant 0.000000e+00 : f32
    %16 = vector.broadcast %cst_11 : f32 to vector<32x128xf32>
    %17 = arith.maximumf %15, %16 : vector<32x128xf32>
    %18 = arith.truncf %17 : vector<32x128xf32> to vector<32x128xbf16>
    %c0_12 = arith.constant 0 : index
    %c0_13 = arith.constant 0 : index
    %19 = vector.load %arg6[%c0_12, %c0_13] : memref<128x128xbf16, #tpu.memory_space<vmem>>, vector<128x128xbf16>
    %cst_14 = arith.constant dense<0.000000e+00> : vector<32x128xf32>
    %20 = tpu.matmul %18, %19, %cst_14 {dimension_numbers = #tpu.dot_dimension_numbers<[1], [0], [0], [1], [0, 0, 1, 1], [], []>} : vector<32x128xbf16>, vector<128x128xbf16>, vector<32x128xf32> -> vector<32x128xf32>
    %c0_15 = arith.constant 0 : index
    %c0_16 = arith.constant 0 : index
    %21 = vector.load %arg7[%c0_15, %c0_16] : memref<1x128xf32, #tpu.memory_space<vmem>>, vector<1x128xf32>
    %22 = vector.broadcast %21 : vector<1x128xf32> to vector<32x128xf32>
    %23 = arith.addf %20, %22 : vector<32x128xf32>
    %cst_17 = arith.constant 0.000000e+00 : f32
    %24 = vector.broadcast %cst_17 : f32 to vector<32x128xf32>
    %25 = arith.maximumf %23, %24 : vector<32x128xf32>
    %26 = arith.truncf %25 : vector<32x128xf32> to vector<32x128xbf16>
    %c0_18 = arith.constant 0 : index
    %c0_19 = arith.constant 0 : index
    %27 = vector.load %arg8[%c0_18, %c0_19] : memref<128x128xbf16, #tpu.memory_space<vmem>>, vector<128x128xbf16>
    %cst_20 = arith.constant dense<0.000000e+00> : vector<32x128xf32>
    %28 = tpu.matmul %26, %27, %cst_20 {dimension_numbers = #tpu.dot_dimension_numbers<[1], [0], [0], [1], [0, 0, 1, 1], [], []>} : vector<32x128xbf16>, vector<128x128xbf16>, vector<32x128xf32> -> vector<32x128xf32>
    %29 = arith.truncf %28 : vector<32x128xf32> to vector<32x128xbf16>
    %c0_21 = arith.constant 0 : index
    %c0_22 = arith.constant 0 : index
    %30 = vector.load %arg9[%c0_21, %c0_22] : memref<32x128xbf16, #tpu.memory_space<vmem>>, vector<32x128xbf16>
    tpu.vector_store %arg9[%c0_21, %c0_22], %29 {strides = array<i32>} : memref<32x128xbf16, #tpu.memory_space<vmem>>, vector<32x128xbf16>,
    return
  }
  func.func @transform_0(%arg0: i32) -> (i32, i32) {
    %c0_i32 = arith.constant 0 : i32
    %c0_i32_0 = arith.constant 0 : i32
    return %arg0, %c0_i32 : i32, i32
  }
  func.func @transform_1(%arg0: i32) -> (i32, i32) {
    %c0_i32 = arith.constant 0 : i32
    %c0_i32_0 = arith.constant 0 : i32
    %c0_i32_1 = arith.constant 0 : i32
    return %c0_i32, %c0_i32_0 : i32, i32
  }
  func.func @transform_2(%arg0: i32) -> (i32, i32) {
    %c0_i32 = arith.constant 0 : i32
    %c0_i32_0 = arith.constant 0 : i32
    %c0_i32_1 = arith.constant 0 : i32
    return %c0_i32, %c0_i32_0 : i32, i32
  }
  func.func @transform_3(%arg0: i32) -> (i32, i32) {
    %c0_i32 = arith.constant 0 : i32
    %c0_i32_0 = arith.constant 0 : i32
    %c0_i32_1 = arith.constant 0 : i32
    return %c0_i32, %c0_i32_0 : i32, i32
  }
  func.func @transform_4(%arg0: i32) -> (i32, i32) {
    %c0_i32 = arith.constant 0 : i32
    %c0_i32_0 = arith.constant 0 : i32
    %c0_i32_1 = arith.constant 0 : i32
    return %c0_i32, %c0_i32_0 : i32, i32
  }
  func.func @transform_5(%arg0: i32) -> (i32, i32) {
    %c0_i32 = arith.constant 0 : i32
    %c0_i32_0 = arith.constant 0 : i32
    %c0_i32_1 = arith.constant 0 : i32
    return %c0_i32, %c0_i32_0 : i32, i32
  }
  func.func @transform_6(%arg0: i32) -> (i32, i32) {
    %c0_i32 = arith.constant 0 : i32
    %c0_i32_0 = arith.constant 0 : i32
    %c0_i32_1 = arith.constant 0 : i32
    return %c0_i32, %c0_i32_0 : i32, i32
  }
  func.func @transform_7(%arg0: i32) -> (i32, i32) {
    %c0_i32 = arith.constant 0 : i32
    %c0_i32_0 = arith.constant 0 : i32
    %c0_i32_1 = arith.constant 0 : i32
    return %c0_i32, %c0_i32_0 : i32, i32
  }
  func.func @transform_8(%arg0: i32) -> (i32, i32) {
    %c0_i32 = arith.constant 0 : i32
    %c0_i32_0 = arith.constant 0 : i32
    return %arg0, %c0_i32 : i32, i32
  }
}

</mosaic_0001>

<llo_original>
// kernel: tpu_custom_call.1
$region0: #{tpu_custom_call.1}
  #allocation0 [shape = 'u32[]', space=smem, size = 0x4, offset = 0x4, fixed_abs, tag = 'smem constant byte address 0x4 - core index']
  #allocation1 [shape = 'u32[72,128]{1,0:T(1,128)}', space=vmem, size = 0x9000, scoped, tag = 'internal scratch']
  %s0 = inlined_call_operand.hbm [shape: u8[32,2352], index: 0, kind: input, shape index: {}]
  %s1 = inlined_call_operand.hbm [shape: bf16[2352,128], index: 1, kind: input, shape index: {}]
  %s2 = inlined_call_operand.vmem [shape: f32[1,128], index: 2, kind: input, shape index: {}]
  %s3 = inlined_call_operand.hbm [shape: bf16[128,128], index: 3, kind: input, shape index: {}]
  %s4 = inlined_call_operand.vmem [shape: f32[1,128], index: 4, kind: input, shape index: {}]
  %s5 = inlined_call_operand.hbm [shape: bf16[128,128], index: 5, kind: input, shape index: {}]
  %s6 = inlined_call_operand.vmem [shape: f32[1,128], index: 6, kind: input, shape index: {}]
  %s7 = inlined_call_operand.hbm [shape: bf16[128,128], index: 7, kind: input, shape index: {}]
  %s8 = inlined_call_operand.hbm [shape: bf16[32,128], index: 8, kind: output, shape index: {}]
  %s9 = sld [smem:[#allocation0]]
  $region62: #{tpu_custom_call.1} parent=0
    _
  %s11 = ssub.s32 1, %s9
  %s12 = scalar_select 0, %s11, %s9
  $region1: #{tpu_custom_call.1} parent=0
    #allocation2 [shape = 'u8[77824]{0}', space=vmem, size = 0x13000, scoped, tag = 'input window, operand 0, single buffered']
    #allocation3 [shape = 's32[1]{0}', space=sflag, size = 0x4, scoped, tag = 'scoped memory for tpu_custom_call.1']
    #allocation4 [shape = 's32[1]{0}', space=sflag, size = 0x4, scoped, tag = 'scoped memory for tpu_custom_call.1']
    #allocation5 [shape = 'u8[602112]{0}', space=vmem, size = 0x93000, scoped, tag = 'input window, operand 1, single buffered']
    #allocation6 [shape = 's32[1]{0}', space=sflag, size = 0x4, scoped, tag = 'scoped memory for tpu_custom_call.1']
    #allocation7 [shape = 'u8[32768]{0}', space=vmem, size = 0x8000, scoped, tag = 'input window, operand 3, single buffered']
    #allocation8 [shape = 'u8[32768]{0}', space=vmem, size = 0x8000, scoped, tag = 'input window, operand 5, single buffered']
    #allocation9 [shape = 's32[1]{0}', space=sflag, size = 0x4, scoped, tag = 'scoped memory for tpu_custom_call.1']
    #allocation10 [shape = 'u8[32768]{0}', space=vmem, size = 0x8000, scoped, tag = 'input window, operand 7, single buffered']
    #allocation11 [shape = 'u8[8192]{0}', space=vmem, size = 0x2000, scoped, tag = 'output window, operand 0, single buffered']
    %13 = vsyncpa [#allocation3], 0
    %14 = vsyncpa [#allocation6], 0
    %15 = vsyncpa [#allocation9], 0
    %16 = vsyncpa [#allocation4], 0
    // Predicated region
    $region2: #{tpu_custom_call.1} parent=1 // pred_check
      _
    $region3: #{tpu_custom_call.1} parent=1 // pred_check_branch
      %18 = sbr.rel (0) target = $region5
    $region4: #{tpu_custom_call.1} parent=1 // pred_region
      %20 = vsyncadd [#allocation3], 0
      %s22 = sshll.u32 %s0, 4
      %s23 = int_to_ptr.hbm [resolvable:$true] %s22
      %s24 = sshll.u32 [#allocation2], 4
      %s25 = int_to_ptr.vmem [resolvable:$true] %s24
      %27 = dma.hbm_to_vmem [thread:$0]  %s23, 2432, %s25, [#allocation3]
    $region5: #{tpu_custom_call.1} parent=1 // pred_fallthru
      _
    // Predicated region
    $region6: #{tpu_custom_call.1} parent=1 // pred_check
      _
    $region7: #{tpu_custom_call.1} parent=1 // pred_check_branch
      %29 = sbr.rel (0) target = $region9
    $region8: #{tpu_custom_call.1} parent=1 // pred_region
      %31 = vsyncadd [#allocation6], 0
      %s32 = sshll.u32 %s1, 4
      %s33 = int_to_ptr.hbm [resolvable:$true] %s32
      %s34 = sshll.u32 [#allocation5], 4
      %s35 = int_to_ptr.vmem [resolvable:$true] %s34
      %40 = dma.hbm_to_vmem [thread:$0]  %s33, 18816, %s35, [#allocation6], 64, 64, 4
    $region9: #{tpu_custom_call.1} parent=1 // pred_fallthru
      _
    // Predicated region
    $region10: #{tpu_custom_call.1} parent=1 // pred_check
      _
    $region11: #{tpu_custom_call.1} parent=1 // pred_check_branch
      %42 = sbr.rel (0) target = $region13
    $region12: #{tpu_custom_call.1} parent=1 // pred_region
      _
    $region13: #{tpu_custom_call.1} parent=1 // pred_fallthru
      _
    // Predicated region
    $region14: #{tpu_custom_call.1} parent=1 // pred_check
      _
    $region15: #{tpu_custom_call.1} parent=1 // pred_check_branch
      %44 = sbr.rel (0) target = $region17
    $region16: #{tpu_custom_call.1} parent=1 // pred_region
      %46 = vsyncadd [#allocation6], 0
      %s47 = sshll.u32 %s3, 4
      %s48 = int_to_ptr.hbm [resolvable:$true] %s47
      %s49 = sshll.u32 [#allocation7], 4
      %s50 = int_to_ptr.vmem [resolvable:$true] %s49
      %55 = dma.hbm_to_vmem [thread:$0]  %s48, 1024, %s50, [#allocation6], 64, 64, 4
    $region17: #{tpu_custom_call.1} parent=1 // pred_fallthru
      _
    // Predicated region
    $region18: #{tpu_custom_call.1} parent=1 // pred_check
      _
    $region19: #{tpu_custom_call.1} parent=1 // pred_check_branch
      %57 = sbr.rel (0) target = $region21
    $region20: #{tpu_custom_call.1} parent=1 // pred_region
      _
    $region21: #{tpu_custom_call.1} parent=1 // pred_fallthru
      _
    // Predicated region
    $region22: #{tpu_custom_call.1} parent=1 // pred_check
      _
    $region23: #{tpu_custom_call.1} parent=1 // pred_check_branch
      %59 = sbr.rel (0) target = $region25
    $region24: #{tpu_custom_call.1} parent=1 // pred_region
      %61 = vsyncadd [#allocation9], 0
      %s62 = sshll.u32 %s5, 4
      %s63 = int_to_ptr.hbm [resolvable:$true] %s62
      %s64 = sshll.u32 [#allocation8], 4
      %s65 = int_to_ptr.vmem [resolvable:$true] %s64
      %70 = dma.hbm_to_vmem [thread:$0]  %s63, 1024, %s65, [#allocation9], 64, 64, 4
    $region25: #{tpu_custom_call.1} parent=1 // pred_fallthru
      _
    // Predicated region
    $region26: #{tpu_custom_call.1} parent=1 // pred_check
      _
    $region27: #{tpu_custom_call.1} parent=1 // pred_check_branch
      %72 = sbr.rel (0) target = $region29
    $region28: #{tpu_custom_call.1} parent=1 // pred_region
      _
    $region29: #{tpu_custom_call.1} parent=1 // pred_fallthru
      _
    // Predicated region
    $region30: #{tpu_custom_call.1} parent=1 // pred_check
      _
    $region31: #{tpu_custom_call.1} parent=1 // pred_check_branch
      %74 = sbr.rel (0) target = $region33
    $region32: #{tpu_custom_call.1} parent=1 // pred_region
      %76 = vsyncadd [#allocation9], 0
      %s77 = sshll.u32 %s7, 4
      %s78 = int_to_ptr.hbm [resolvable:$true] %s77
      %s79 = sshll.u32 [#allocation10], 4
      %s80 = int_to_ptr.vmem [resolvable:$true] %s79
      %85 = dma.hbm_to_vmem [thread:$0]  %s78, 1024, %s80, [#allocation9], 64, 64, 4
    $region33: #{tpu_custom_call.1} parent=1 // pred_fallthru
      _
    // Predicated region
    $region34: #{tpu_custom_call.1} parent=1 // pred_check
      _
    $region35: #{tpu_custom_call.1} parent=1 // pred_check_branch
      %87 = sbr.rel (0) target = $region37
    $region36: #{tpu_custom_call.1} parent=1 // pred_region
      %89 = dma.done [#allocation3], 2432
    $region37: #{tpu_custom_call.1} parent=1 // pred_fallthru
      _
    // Predicated region
    $region38: #{tpu_custom_call.1} parent=1 // pred_check
      _
    $region39: #{tpu_custom_call.1} parent=1 // pred_check_branch
      %91 = sbr.rel (0) target = $region41
    $region40: #{tpu_custom_call.1} parent=1 // pred_region
      %93 = dma.done [#allocation6], 18816
    $region41: #{tpu_custom_call.1} parent=1 // pred_fallthru
      _
    // Predicated region
    $region42: #{tpu_custom_call.1} parent=1 // pred_check
      _
    $region43: #{tpu_custom_call.1} parent=1 // pred_check_branch
      %95 = sbr.rel (0) target = $region45
    $region44: #{tpu_custom_call.1} parent=1 // pred_region
      %97 = dma.done [#allocation6], 1024
    $region45: #{tpu_custom_call.1} parent=1 // pred_fallthru
      _
    // Predicated region
    $region46: #{tpu_custom_call.1} parent=1 // pred_check
      _
    $region47: #{tpu_custom_call.1} parent=1 // pred_check_branch
      %99 = sbr.rel (0) target = $region49
    $region48: #{tpu_custom_call.1} parent=1 // pred_region
      %101 = dma.done [#allocation9], 1024
    $region49: #{tpu_custom_call.1} parent=1 // pred_fallthru
      _
    // Predicated region
    $region50: #{tpu_custom_call.1} parent=1 // pred_check
      _
    $region51: #{tpu_custom_call.1} parent=1 // pred_check_branch
      %103 = sbr.rel (0) target = $region53
    $region52: #{tpu_custom_call.1} parent=1 // pred_region
      %105 = dma.done [#allocation9], 1024
    $region53: #{tpu_custom_call.1} parent=1 // pred_fallthru
      _
    %v107 = vld [vmem:[#allocation2] sm:$0xff]
    %v108 = vld [vmem:[#allocation2 + $0x8] sm:$0xff]
    %v109 = vld [vmem:[#allocation2 + $0x10] sm:$0xff]
    %v110 = vld [vmem:[#allocation2 + $0x18] sm:$0xff]
    %v111 = vld [vmem:[#allocation2 + $0x20] sm:$0xff]
    %v112 = vld [vmem:[#allocation2 + $0x28] sm:$0xff]
    %v113 = vld [vmem:[#allocation2 + $0x30] sm:$0xff]
    %v114 = vld [vmem:[#allocation2 + $0x38] sm:$0xff]
    %v115 = vld [vmem:[#allocation2 + $0x40] sm:$0xff]
    %v116 = vld [vmem:[#allocation2 + $0x48] sm:$0xff]
    %v117 = vld [vmem:[#allocation2 + $0x50] sm:$0xff]
    %v118 = vld [vmem:[#allocation2 + $0x58] sm:$0xff]
    %v119 = vld [vmem:[#allocation2 + $0x60] sm:$0xff]
    %v120 = vld [vmem:[#allocation2 + $0x68] sm:$0xff]
    %v121 = vld [vmem:[#allocation2 + $0x70] sm:$0xff]
    %v122 = vld [vmem:[#allocation2 + $0x78] sm:$0xff]
    %v123 = vld [vmem:[#allocation2 + $0x80] sm:$0xff]
    %v124 = vld [vmem:[#allocation2 + $0x88] sm:$0xff]
    %v125 = vld [vmem:[#allocation2 + $0x90] sm:$0xff]
    %v126 = vunpack.c.0.s8 %v107
    %v127 = vunpack.c.0.s8 %v108
    %v128 = vunpack.c.0.s8 %v109
    %v129 = vunpack.c.0.s8 %v110
    %v130 = vunpack.c.0.s8 %v111
    %v131 = vunpack.c.0.s8 %v112
    %v132 = vunpack.c.0.s8 %v113
    %v133 = vunpack.c.0.s8 %v114
    %v134 = vunpack.c.0.s8 %v115
    %v135 = vunpack.c.0.s8 %v116
    %v136 = vunpack.c.0.s8 %v117
    %v137 = vunpack.c.0.s8 %v118
    %v138 = vunpack.c.0.s8 %v119
    %v139 = vunpack.c.0.s8 %v120
    %v140 = vunpack.c.0.s8 %v121
    %v141 = vunpack.c.0.s8 %v122
    %v142 = vunpack.c.0.s8 %v123
    %v143 = vunpack.c.0.s8 %v124
    %v144 = vunpack.c.0.s8 %v125
    %v145 = vunpack.c.1.s8 %v107
    %v146 = vunpack.c.1.s8 %v108
    %v147 = vunpack.c.1.s8 %v109
    %v148 = vunpack.c.1.s8 %v110
    %v149 = vunpack.c.1.s8 %v111
    %v150 = vunpack.c.1.s8 %v112
    %v151 = vunpack.c.1.s8 %v113
    %v152 = vunpack.c.1.s8 %v114
    %v153 = vunpack.c.1.s8 %v115
    %v154 = vunpack.c.1.s8 %v116
    %v155 = vunpack.c.1.s8 %v117
    %v156 = vunpack.c.1.s8 %v118
    %v157 = vunpack.c.1.s8 %v119
    %v158 = vunpack.c.1.s8 %v120
    %v159 = vunpack.c.1.s8 %v121
    %v160 = vunpack.c.1.s8 %v122
    %v161 = vunpack.c.1.s8 %v123
    %v162 = vunpack.c.1.s8 %v124
    %v163 = vunpack.c.1.s8 %v125
    %v164 = vunpack.c.2.s8 %v107
    %v165 = vunpack.c.2.s8 %v108
    %v166 = vunpack.c.2.s8 %v109
    %v167 = vunpack.c.2.s8 %v110
    %v168 = vunpack.c.2.s8 %v111
    %v169 = vunpack.c.2.s8 %v112
    %v170 = vunpack.c.2.s8 %v113
    %v171 = vunpack.c.2.s8 %v114
    %v172 = vunpack.c.2.s8 %v115
    %v173 = vunpack.c.2.s8 %v116
    %v174 = vunpack.c.2.s8 %v117
    %v175 = vunpack.c.2.s8 %v118
    %v176 = vunpack.c.2.s8 %v119
    %v177 = vunpack.c.2.s8 %v120
    %v178 = vunpack.c.2.s8 %v121
    %v179 = vunpack.c.2.s8 %v122
    %v180 = vunpack.c.2.s8 %v123
    %v181 = vunpack.c.2.s8 %v124
    %v182 = vunpack.c.2.s8 %v125
    %v183 = vunpack.c.3.s8 %v107
    %v184 = vunpack.c.3.s8 %v108
    %v185 = vunpack.c.3.s8 %v109
    %v186 = vunpack.c.3.s8 %v110
    %v187 = vunpack.c.3.s8 %v111
    %v188 = vunpack.c.3.s8 %v112
    %v189 = vunpack.c.3.s8 %v113
    %v190 = vunpack.c.3.s8 %v114
    %v191 = vunpack.c.3.s8 %v115
    %v192 = vunpack.c.3.s8 %v116
    %v193 = vunpack.c.3.s8 %v117
    %v194 = vunpack.c.3.s8 %v118
    %v195 = vunpack.c.3.s8 %v119
    %v196 = vunpack.c.3.s8 %v120
    %v197 = vunpack.c.3.s8 %v121
    %v198 = vunpack.c.3.s8 %v122
    %v199 = vunpack.c.3.s8 %v123
    %v200 = vunpack.c.3.s8 %v124
    %v201 = vunpack.c.3.s8 %v125
    %v202 = vand.u32 %v126, 255
    %v203 = vand.u32 %v127, 255
    %v204 = vand.u32 %v128, 255
    %v205 = vand.u32 %v129, 255
    %v206 = vand.u32 %v130, 255
    %v207 = vand.u32 %v131, 255
    %v208 = vand.u32 %v132, 255
    %v209 = vand.u32 %v133, 255
    %v210 = vand.u32 %v134, 255
    %v211 = vand.u32 %v135, 255
    %v212 = vand.u32 %v136, 255
    %v213 = vand.u32 %v137, 255
    %v214 = vand.u32 %v138, 255
    %v215 = vand.u32 %v139, 255
    %v216 = vand.u32 %v140, 255
    %v217 = vand.u32 %v141, 255
    %v218 = vand.u32 %v142, 255
    %v219 = vand.u32 %v143, 255
    %v220 = vand.u32 %v144, 255
    %v221 = vand.u32 %v145, 255
    %v222 = vand.u32 %v146, 255
    %v223 = vand.u32 %v147, 255
    %v224 = vand.u32 %v148, 255
    %v225 = vand.u32 %v149, 255
    %v226 = vand.u32 %v150, 255
    %v227 = vand.u32 %v151, 255
    %v228 = vand.u32 %v152, 255
    %v229 = vand.u32 %v153, 255
    %v230 = vand.u32 %v154, 255
    %v231 = vand.u32 %v155, 255
    %v232 = vand.u32 %v156, 255
    %v233 = vand.u32 %v157, 255
    %v234 = vand.u32 %v158, 255
    %v235 = vand.u32 %v159, 255
    %v236 = vand.u32 %v160, 255
    %v237 = vand.u32 %v161, 255
    %v238 = vand.u32 %v162, 255
    %v239 = vand.u32 %v163, 255
    %v240 = vand.u32 %v164, 255
    %v241 = vand.u32 %v165, 255
    %v242 = vand.u32 %v166, 255
    %v243 = vand.u32 %v167, 255
    %v244 = vand.u32 %v168, 255
    %v245 = vand.u32 %v169, 255
    %v246 = vand.u32 %v170, 255
    %v247 = vand.u32 %v171, 255
    %v248 = vand.u32 %v172, 255
    %v249 = vand.u32 %v173, 255
    %v250 = vand.u32 %v174, 255
    %v251 = vand.u32 %v175, 255
    %v252 = vand.u32 %v176, 255
    %v253 = vand.u32 %v177, 255
    %v254 = vand.u32 %v178, 255
    %v255 = vand.u32 %v179, 255
    %v256 = vand.u32 %v180, 255
    %v257 = vand.u32 %v181, 255
    %v258 = vand.u32 %v182, 255
    %v259 = vand.u32 %v183, 255
    %v260 = vand.u32 %v184, 255
    %v261 = vand.u32 %v185, 255
    %v262 = vand.u32 %v186, 255
    %v263 = vand.u32 %v187, 255
    %v264 = vand.u32 %v188, 255
    %v265 = vand.u32 %v189, 255
    %v266 = vand.u32 %v190, 255
    %v267 = vand.u32 %v191, 255
    %v268 = vand.u32 %v192, 255
    %v269 = vand.u32 %v193, 255
    %v270 = vand.u32 %v194, 255
    %v271 = vand.u32 %v195, 255
    %v272 = vand.u32 %v196, 255
    %v273 = vand.u32 %v197, 255
    %v274 = vand.u32 %v198, 255
    %v275 = vand.u32 %v199, 255
    %v276 = vand.u32 %v200, 255
    %v277 = vand.u32 %v201, 255
    %v278 = vcvt.s32.f32 %v202
    %v279 = vcvt.s32.f32 %v203
    %v280 = vcvt.s32.f32 %v204
    %v281 = vcvt.s32.f32 %v205
    %v282 = vcvt.s32.f32 %v206
    %v283 = vcvt.s32.f32 %v207
    %v284 = vcvt.s32.f32 %v208
    %v285 = vcvt.s32.f32 %v209
    %v286 = vcvt.s32.f32 %v210
    %v287 = vcvt.s32.f32 %v211
    %v288 = vcvt.s32.f32 %v212
    %v289 = vcvt.s32.f32 %v213
    %v290 = vcvt.s32.f32 %v214
    %v291 = vcvt.s32.f32 %v215
    %v292 = vcvt.s32.f32 %v216
    %v293 = vcvt.s32.f32 %v217
    %v294 = vcvt.s32.f32 %v218
    %v295 = vcvt.s32.f32 %v219
    %v296 = vcvt.s32.f32 %v220
    %v297 = vcvt.s32.f32 %v221
    %v298 = vcvt.s32.f32 %v222
    %v299 = vcvt.s32.f32 %v223
    %v300 = vcvt.s32.f32 %v224
    %v301 = vcvt.s32.f32 %v225
    %v302 = vcvt.s32.f32 %v226
    %v303 = vcvt.s32.f32 %v227
    %v304 = vcvt.s32.f32 %v228
    %v305 = vcvt.s32.f32 %v229
    %v306 = vcvt.s32.f32 %v230
    %v307 = vcvt.s32.f32 %v231
    %v308 = vcvt.s32.f32 %v232
    %v309 = vcvt.s32.f32 %v233
    %v310 = vcvt.s32.f32 %v234
    %v311 = vcvt.s32.f32 %v235
    %v312 = vcvt.s32.f32 %v236
    %v313 = vcvt.s32.f32 %v237
    %v314 = vcvt.s32.f32 %v238
    %v315 = vcvt.s32.f32 %v239
    %v316 = vcvt.s32.f32 %v240
    %v317 = vcvt.s32.f32 %v241
    %v318 = vcvt.s32.f32 %v242
    %v319 = vcvt.s32.f32 %v243
    %v320 = vcvt.s32.f32 %v244
    %v321 = vcvt.s32.f32 %v245
    %v322 = vcvt.s32.f32 %v246
    %v323 = vcvt.s32.f32 %v247
    %v324 = vcvt.s32.f32 %v248
    %v325 = vcvt.s32.f32 %v249
    %v326 = vcvt.s32.f32 %v250
    %v327 = vcvt.s32.f32 %v251
    %v328 = vcvt.s32.f32 %v252
    %v329 = vcvt.s32.f32 %v253
    %v330 = vcvt.s32.f32 %v254
    %v331 = vcvt.s32.f32 %v255
    %v332 = vcvt.s32.f32 %v256
    %v333 = vcvt.s32.f32 %v257
    %v334 = vcvt.s32.f32 %v258
    %v335 = vcvt.s32.f32 %v259
    %v336 = vcvt.s32.f32 %v260
    %v337 = vcvt.s32.f32 %v261
    %v338 = vcvt.s32.f32 %v262
    %v339 = vcvt.s32.f32 %v263
    %v340 = vcvt.s32.f32 %v264
    %v341 = vcvt.s32.f32 %v265
    %v342 = vcvt.s32.f32 %v266
    %v343 = vcvt.s32.f32 %v267
    %v344 = vcvt.s32.f32 %v268
    %v345 = vcvt.s32.f32 %v269
    %v346 = vcvt.s32.f32 %v270
    %v347 = vcvt.s32.f32 %v271
    %v348 = vcvt.s32.f32 %v272
    %v349 = vcvt.s32.f32 %v273
    %v350 = vcvt.s32.f32 %v274
    %v351 = vcvt.s32.f32 %v275
    %v352 = vcvt.s32.f32 %v276
    %v353 = vcvt.s32.f32 %v277
    %v354 = vpack.c.bf16 %v297, %v278
    %v355 = vpack.c.bf16 %v298, %v279
    %v356 = vpack.c.bf16 %v299, %v280
    %v357 = vpack.c.bf16 %v300, %v281
    %v358 = vpack.c.bf16 %v301, %v282
    %v359 = vpack.c.bf16 %v302, %v283
    %v360 = vpack.c.bf16 %v303, %v284
    %v361 = vpack.c.bf16 %v304, %v285
    %v362 = vpack.c.bf16 %v305, %v286
    %v363 = vpack.c.bf16 %v306, %v287
    %v364 = vpack.c.bf16 %v307, %v288
    %v365 = vpack.c.bf16 %v308, %v289
    %v366 = vpack.c.bf16 %v309, %v290
    %v367 = vpack.c.bf16 %v310, %v291
    %v368 = vpack.c.bf16 %v311, %v292
    %v369 = vpack.c.bf16 %v312, %v293
    %v370 = vpack.c.bf16 %v313, %v294
    %v371 = vpack.c.bf16 %v314, %v295
    %v372 = vpack.c.bf16 %v315, %v296
    %v373 = vpack.c.bf16 %v335, %v316
    %v374 = vpack.c.bf16 %v336, %v317
    %v375 = vpack.c.bf16 %v337, %v318
    %v376 = vpack.c.bf16 %v338, %v319
    %v377 = vpack.c.bf16 %v339, %v320
    %v378 = vpack.c.bf16 %v340, %v321
    %v379 = vpack.c.bf16 %v341, %v322
    %v380 = vpack.c.bf16 %v342, %v323
    %v381 = vpack.c.bf16 %v343, %v324
    %v382 = vpack.c.bf16 %v344, %v325
    %v383 = vpack.c.bf16 %v345, %v326
    %v384 = vpack.c.bf16 %v346, %v327
    %v385 = vpack.c.bf16 %v347, %v328
    %v386 = vpack.c.bf16 %v348, %v329
    %v387 = vpack.c.bf16 %v349, %v330
    %v388 = vpack.c.bf16 %v350, %v331
    %v389 = vpack.c.bf16 %v351, %v332
    %v390 = vpack.c.bf16 %v352, %v333
    %v391 = vpack.c.bf16 %v353, %v334
    %v392 = vld [vmem:[#allocation5] sm:$0xf]
    %v393 = vld [vmem:[#allocation5 + $0x4] sm:$0xf]
    %v394 = vld [vmem:[#allocation5 + $0x8] sm:$0xf]
    %v395 = vld [vmem:[#allocation5 + $0xc] sm:$0xf]
    %v396 = vld [vmem:[#allocation5 + $0x10] sm:$0xf]
    %v397 = vld [vmem:[#allocation5 + $0x14] sm:$0xf]
    %v398 = vld [vmem:[#allocation5 + $0x18] sm:$0xf]
    %v399 = vld [vmem:[#allocation5 + $0x1c] sm:$0xf]
    %v400 = vld [vmem:[#allocation5 + $0x20] sm:$0xf]
    %v401 = vld [vmem:[#allocation5 + $0x24] sm:$0xf]
    %v402 = vld [vmem:[#allocation5 + $0x28] sm:$0xf]
    %v403 = vld [vmem:[#allocation5 + $0x2c] sm:$0xf]
    %v404 = vld [vmem:[#allocation5 + $0x30] sm:$0xf]
    %v405 = vld [vmem:[#allocation5 + $0x34] sm:$0xf]
    %v406 = vld [vmem:[#allocation5 + $0x38] sm:$0xf]
    %v407 = vld [vmem:[#allocation5 + $0x3c] sm:$0xf]
    %v408 = vld [vmem:[#allocation5 + $0x40] sm:$0xf]
    %v409 = vld [vmem:[#allocation5 + $0x44] sm:$0xf]
    %v410 = vld [vmem:[#allocation5 + $0x48] sm:$0xf]
    %v411 = vld [vmem:[#allocation5 + $0x4c] sm:$0xf]
    %v412 = vld [vmem:[#allocation5 + $0x50] sm:$0xf]
    %v413 = vld [vmem:[#allocation5 + $0x54] sm:$0xf]
    %v414 = vld [vmem:[#allocation5 + $0x58] sm:$0xf]
    %v415 = vld [vmem:[#allocation5 + $0x5c] sm:$0xf]
    %v416 = vld [vmem:[#allocation5 + $0x60] sm:$0xf]
    %v417 = vld [vmem:[#allocation5 + $0x64] sm:$0xf]
    %v418 = vld [vmem:[#allocation5 + $0x68] sm:$0xf]
    %v419 = vld [vmem:[#allocation5 + $0x6c] sm:$0xf]
    %v420 = vld [vmem:[#allocation5 + $0x70] sm:$0xf]
    %v421 = vld [vmem:[#allocation5 + $0x74] sm:$0xf]
    %v422 = vld [vmem:[#allocation5 + $0x78] sm:$0xf]
    %v423 = vld [vmem:[#allocation5 + $0x7c] sm:$0xf]
    %v424 = vld [vmem:[#allocation5 + $0x80] sm:$0xf]
    %v425 = vld [vmem:[#allocation5 + $0x84] sm:$0xf]
    %v426 = vld [vmem:[#allocation5 + $0x88] sm:$0xf]
    %v427 = vld [vmem:[#allocation5 + $0x8c] sm:$0xf]
    %v428 = vld [vmem:[#allocation5 + $0x90] sm:$0xf]
    %v429 = vld [vmem:[#allocation5 + $0x94] sm:$0xf]
    %v430 = vld [vmem:[#allocation5 + $0x98] sm:$0xf]
    %v431 = vld [vmem:[#allocation5 + $0x9c] sm:$0xf]
    %v432 = vld [vmem:[#allocation5 + $0xa0] sm:$0xf]
    %v433 = vld [vmem:[#allocation5 + $0xa4] sm:$0xf]
    %v434 = vld [vmem:[#allocation5 + $0xa8] sm:$0xf]
    %v435 = vld [vmem:[#allocation5 + $0xac] sm:$0xf]
    %v436 = vld [vmem:[#allocation5 + $0xb0] sm:$0xf]
    %v437 = vld [vmem:[#allocation5 + $0xb4] sm:$0xf]
    %v438 = vld [vmem:[#allocation5 + $0xb8] sm:$0xf]
    %v439 = vld [vmem:[#allocation5 + $0xbc] sm:$0xf]
    %v440 = vld [vmem:[#allocation5 + $0xc0] sm:$0xf]
    %v441 = vld [vmem:[#allocation5 + $0xc4] sm:$0xf]
    %v442 = vld [vmem:[#allocation5 + $0xc8] sm:$0xf]
    %v443 = vld [vmem:[#allocation5 + $0xcc] sm:$0xf]
    %v444 = vld [vmem:[#allocation5 + $0xd0] sm:$0xf]
    %v445 = vld [vmem:[#allocation5 + $0xd4] sm:$0xf]
    %v446 = vld [vmem:[#allocation5 + $0xd8] sm:$0xf]
    %v447 = vld [vmem:[#allocation5 + $0xdc] sm:$0xf]
    %v448 = vld [vmem:[#allocation5 + $0xe0] sm:$0xf]
    %v449 = vld [vmem:[#allocation5 + $0xe4] sm:$0xf]
    %v450 = vld [vmem:[#allocation5 + $0xe8] sm:$0xf]
    %v451 = vld [vmem:[#allocation5 + $0xec] sm:$0xf]
    %v452 = vld [vmem:[#allocation5 + $0xf0] sm:$0xf]
    %v453 = vld [vmem:[#allocation5 + $0xf4] sm:$0xf]
    %v454 = vld [vmem:[#allocation5 + $0xf8] sm:$0xf]
    %v455 = vld [vmem:[#allocation5 + $0xfc] sm:$0xf]
    %v456 = vld [vmem:[#allocation5 + $0x100] sm:$0xf]
    %v457 = vld [vmem:[#allocation5 + $0x104] sm:$0xf]
    %v458 = vld [vmem:[#allocation5 + $0x108] sm:$0xf]
    %v459 = vld [vmem:[#allocation5 + $0x10c] sm:$0xf]
    %v460 = vld [vmem:[#allocation5 + $0x110] sm:$0xf]
    %v461 = vld [vmem:[#allocation5 + $0x114] sm:$0xf]
    %v462 = vld [vmem:[#allocation5 + $0x118] sm:$0xf]
    %v463 = vld [vmem:[#allocation5 + $0x11c] sm:$0xf]
    %v464 = vld [vmem:[#allocation5 + $0x120] sm:$0xf]
    %v465 = vld [vmem:[#allocation5 + $0x124] sm:$0xf]
    %v466 = vld [vmem:[#allocation5 + $0x128] sm:$0xf]
    %v467 = vld [vmem:[#allocation5 + $0x12c] sm:$0xf]
    %v468 = vld [vmem:[#allocation5 + $0x130] sm:$0xf]
    %v469 = vld [vmem:[#allocation5 + $0x134] sm:$0xf]
    %v470 = vld [vmem:[#allocation5 + $0x138] sm:$0xf]
    %v471 = vld [vmem:[#allocation5 + $0x13c] sm:$0xf]
    %v472 = vld [vmem:[#allocation5 + $0x140] sm:$0xf]
    %v473 = vld [vmem:[#allocation5 + $0x144] sm:$0xf]
    %v474 = vld [vmem:[#allocation5 + $0x148] sm:$0xf]
    %v475 = vld [vmem:[#allocation5 + $0x14c] sm:$0xf]
    %v476 = vld [vmem:[#allocation5 + $0x150] sm:$0xf]
    %v477 = vld [vmem:[#allocation5 + $0x154] sm:$0xf]
    %v478 = vld [vmem:[#allocation5 + $0x158] sm:$0xf]
    %v479 = vld [vmem:[#allocation5 + $0x15c] sm:$0xf]
    %v480 = vld [vmem:[#allocation5 + $0x160] sm:$0xf]
    %v481 = vld [vmem:[#allocation5 + $0x164] sm:$0xf]
    %v482 = vld [vmem:[#allocation5 + $0x168] sm:$0xf]
    %v483 = vld [vmem:[#allocation5 + $0x16c] sm:$0xf]
    %v484 = vld [vmem:[#allocation5 + $0x170] sm:$0xf]
    %v485 = vld [vmem:[#allocation5 + $0x174] sm:$0xf]
    %v486 = vld [vmem:[#allocation5 + $0x178] sm:$0xf]
    %v487 = vld [vmem:[#allocation5 + $0x17c] sm:$0xf]
    %v488 = vld [vmem:[#allocation5 + $0x180] sm:$0xf]
    %v489 = vld [vmem:[#allocation5 + $0x184] sm:$0xf]
    %v490 = vld [vmem:[#allocation5 + $0x188] sm:$0xf]
    %v491 = vld [vmem:[#allocation5 + $0x18c] sm:$0xf]
    %v492 = vld [vmem:[#allocation5 + $0x190] sm:$0xf]
    %v493 = vld [vmem:[#allocation5 + $0x194] sm:$0xf]
    %v494 = vld [vmem:[#allocation5 + $0x198] sm:$0xf]
    %v495 = vld [vmem:[#allocation5 + $0x19c] sm:$0xf]
    %v496 = vld [vmem:[#allocation5 + $0x1a0] sm:$0xf]
    %v497 = vld [vmem:[#allocation5 + $0x1a4] sm:$0xf]
    %v498 = vld [vmem:[#allocation5 + $0x1a8] sm:$0xf]
    %v499 = vld [vmem:[#allocation5 + $0x1ac] sm:$0xf]
    %v500 = vld [vmem:[#allocation5 + $0x1b0] sm:$0xf]
    %v501 = vld [vmem:[#allocation5 + $0x1b4] sm:$0xf]
    %v502 = vld [vmem:[#allocation5 + $0x1b8] sm:$0xf]
    %v503 = vld [vmem:[#allocation5 + $0x1bc] sm:$0xf]
    %v504 = vld [vmem:[#allocation5 + $0x1c0] sm:$0xf]
    %v505 = vld [vmem:[#allocation5 + $0x1c4] sm:$0xf]
    %v506 = vld [vmem:[#allocation5 + $0x1c8] sm:$0xf]
    %v507 = vld [vmem:[#allocation5 + $0x1cc] sm:$0xf]
    %v508 = vld [vmem:[#allocation5 + $0x1d0] sm:$0xf]
    %v509 = vld [vmem:[#allocation5 + $0x1d4] sm:$0xf]
    %v510 = vld [vmem:[#allocation5 + $0x1d8] sm:$0xf]
    %v511 = vld [vmem:[#allocation5 + $0x1dc] sm:$0xf]
    %v512 = vld [vmem:[#allocation5 + $0x1e0] sm:$0xf]
    %v513 = vld [vmem:[#allocation5 + $0x1e4] sm:$0xf]
    %v514 = vld [vmem:[#allocation5 + $0x1e8] sm:$0xf]
    %v515 = vld [vmem:[#allocation5 + $0x1ec] sm:$0xf]
    %v516 = vld [vmem:[#allocation5 + $0x1f0] sm:$0xf]
    %v517 = vld [vmem:[#allocation5 + $0x1f4] sm:$0xf]
    %v518 = vld [vmem:[#allocation5 + $0x1f8] sm:$0xf]
    %v519 = vld [vmem:[#allocation5 + $0x1fc] sm:$0xf]
    %v520 = vld [vmem:[#allocation5 + $0x200] sm:$0xf]
    %v521 = vld [vmem:[#allocation5 + $0x204] sm:$0xf]
    %v522 = vld [vmem:[#allocation5 + $0x208] sm:$0xf]
    %v523 = vld [vmem:[#allocation5 + $0x20c] sm:$0xf]
    %v524 = vld [vmem:[#allocation5 + $0x210] sm:$0xf]
    %v525 = vld [vmem:[#allocation5 + $0x214] sm:$0xf]
    %v526 = vld [vmem:[#allocation5 + $0x218] sm:$0xf]
    %v527 = vld [vmem:[#allocation5 + $0x21c] sm:$0xf]
    %v528 = vld [vmem:[#allocation5 + $0x220] sm:$0xf]
    %v529 = vld [vmem:[#allocation5 + $0x224] sm:$0xf]
    %v530 = vld [vmem:[#allocation5 + $0x228] sm:$0xf]
    %v531 = vld [vmem:[#allocation5 + $0x22c] sm:$0xf]
    %v532 = vld [vmem:[#allocation5 + $0x230] sm:$0xf]
    %v533 = vld [vmem:[#allocation5 + $0x234] sm:$0xf]
    %v534 = vld [vmem:[#allocation5 + $0x238] sm:$0xf]
    %v535 = vld [vmem:[#allocation5 + $0x23c] sm:$0xf]
    %v536 = vld [vmem:[#allocation5 + $0x240] sm:$0xf]
    %v537 = vld [vmem:[#allocation5 + $0x244] sm:$0xf]
    %v538 = vld [vmem:[#allocation5 + $0x248] sm:$0xf]
    %v539 = vld [vmem:[#allocation5 + $0x24c] sm:$0xf]
    %v540 = vld [vmem:[#allocation5 + $0x250] sm:$0xf]
    %v541 = vld [vmem:[#allocation5 + $0x254] sm:$0xf]
    %v542 = vld [vmem:[#allocation5 + $0x258] sm:$0xf]
    %v543 = vld [vmem:[#allocation5 + $0x25c] sm:$0xf]
    %v544 = vld [vmem:[#allocation5 + $0x260] sm:$0xf]
    %v545 = vld [vmem:[#allocation5 + $0x264] sm:$0xf]
    %v546 = vld [vmem:[#allocation5 + $0x268] sm:$0xf]
    %v547 = vld [vmem:[#allocation5 + $0x26c] sm:$0xf]
    %v548 = vld [vmem:[#allocation5 + $0x270] sm:$0xf]
    %v549 = vld [vmem:[#allocation5 + $0x274] sm:$0xf]
    %v550 = vld [vmem:[#allocation5 + $0x278] sm:$0xf]
    %v551 = vld [vmem:[#allocation5 + $0x27c] sm:$0xf]
    %v552 = vld [vmem:[#allocation5 + $0x280] sm:$0xf]
    %v553 = vld [vmem:[#allocation5 + $0x284] sm:$0xf]
    %v554 = vld [vmem:[#allocation5 + $0x288] sm:$0xf]
    %v555 = vld [vmem:[#allocation5 + $0x28c] sm:$0xf]
    %v556 = vld [vmem:[#allocation5 + $0x290] sm:$0xf]
    %v557 = vld [vmem:[#allocation5 + $0x294] sm:$0xf]
    %v558 = vld [vmem:[#allocation5 + $0x298] sm:$0xf]
    %v559 = vld [vmem:[#allocation5 + $0x29c] sm:$0xf]
    %v560 = vld [vmem:[#allocation5 + $0x2a0] sm:$0xf]
    %v561 = vld [vmem:[#allocation5 + $0x2a4] sm:$0xf]
    %v562 = vld [vmem:[#allocation5 + $0x2a8] sm:$0xf]
    %v563 = vld [vmem:[#allocation5 + $0x2ac] sm:$0xf]
    %v564 = vld [vmem:[#allocation5 + $0x2b0] sm:$0xf]
    %v565 = vld [vmem:[#allocation5 + $0x2b4] sm:$0xf]
    %v566 = vld [vmem:[#allocation5 + $0x2b8] sm:$0xf]
    %v567 = vld [vmem:[#allocation5 + $0x2bc] sm:$0xf]
    %v568 = vld [vmem:[#allocation5 + $0x2c0] sm:$0xf]
    %v569 = vld [vmem:[#allocation5 + $0x2c4] sm:$0xf]
    %v570 = vld [vmem:[#allocation5 + $0x2c8] sm:$0xf]
    %v571 = vld [vmem:[#allocation5 + $0x2cc] sm:$0xf]
    %v572 = vld [vmem:[#allocation5 + $0x2d0] sm:$0xf]
    %v573 = vld [vmem:[#allocation5 + $0x2d4] sm:$0xf]
    %v574 = vld [vmem:[#allocation5 + $0x2d8] sm:$0xf]
    %v575 = vld [vmem:[#allocation5 + $0x2dc] sm:$0xf]
    %v576 = vld [vmem:[#allocation5 + $0x2e0] sm:$0xf]
    %v577 = vld [vmem:[#allocation5 + $0x2e4] sm:$0xf]
    %v578 = vld [vmem:[#allocation5 + $0x2e8] sm:$0xf]
    %v579 = vld [vmem:[#allocation5 + $0x2ec] sm:$0xf]
    %v580 = vld [vmem:[#allocation5 + $0x2f0] sm:$0xf]
    %v581 = vld [vmem:[#allocation5 + $0x2f4] sm:$0xf]
    %v582 = vld [vmem:[#allocation5 + $0x2f8] sm:$0xf]
    %v583 = vld [vmem:[#allocation5 + $0x2fc] sm:$0xf]
    %v584 = vld [vmem:[#allocation5 + $0x300] sm:$0xf]
    %v585 = vld [vmem:[#allocation5 + $0x304] sm:$0xf]
    %v586 = vld [vmem:[#allocation5 + $0x308] sm:$0xf]
    %v587 = vld [vmem:[#allocation5 + $0x30c] sm:$0xf]
    %v588 = vld [vmem:[#allocation5 + $0x310] sm:$0xf]
    %v589 = vld [vmem:[#allocation5 + $0x314] sm:$0xf]
    %v590 = vld [vmem:[#allocation5 + $0x318] sm:$0xf]
    %v591 = vld [vmem:[#allocation5 + $0x31c] sm:$0xf]
    %v592 = vld [vmem:[#allocation5 + $0x320] sm:$0xf]
    %v593 = vld [vmem:[#allocation5 + $0x324] sm:$0xf]
    %v594 = vld [vmem:[#allocation5 + $0x328] sm:$0xf]
    %v595 = vld [vmem:[#allocation5 + $0x32c] sm:$0xf]
    %v596 = vld [vmem:[#allocation5 + $0x330] sm:$0xf]
    %v597 = vld [vmem:[#allocation5 + $0x334] sm:$0xf]
    %v598 = vld [vmem:[#allocation5 + $0x338] sm:$0xf]
    %v599 = vld [vmem:[#allocation5 + $0x33c] sm:$0xf]
    %v600 = vld [vmem:[#allocation5 + $0x340] sm:$0xf]
    %v601 = vld [vmem:[#allocation5 + $0x344] sm:$0xf]
    %v602 = vld [vmem:[#allocation5 + $0x348] sm:$0xf]
    %v603 = vld [vmem:[#allocation5 + $0x34c] sm:$0xf]
    %v604 = vld [vmem:[#allocation5 + $0x350] sm:$0xf]
    %v605 = vld [vmem:[#allocation5 + $0x354] sm:$0xf]
    %v606 = vld [vmem:[#allocation5 + $0x358] sm:$0xf]
    %v607 = vld [vmem:[#allocation5 + $0x35c] sm:$0xf]
    %v608 = vld [vmem:[#allocation5 + $0x360] sm:$0xf]
    %v609 = vld [vmem:[#allocation5 + $0x364] sm:$0xf]
    %v610 = vld [vmem:[#allocation5 + $0x368] sm:$0xf]
    %v611 = vld [vmem:[#allocation5 + $0x36c] sm:$0xf]
    %v612 = vld [vmem:[#allocation5 + $0x370] sm:$0xf]
    %v613 = vld [vmem:[#allocation5 + $0x374] sm:$0xf]
    %v614 = vld [vmem:[#allocation5 + $0x378] sm:$0xf]
    %v615 = vld [vmem:[#allocation5 + $0x37c] sm:$0xf]
    %v616 = vld [vmem:[#allocation5 + $0x380] sm:$0xf]
    %v617 = vld [vmem:[#allocation5 + $0x384] sm:$0xf]
    %v618 = vld [vmem:[#allocation5 + $0x388] sm:$0xf]
    %v619 = vld [vmem:[#allocation5 + $0x38c] sm:$0xf]
    %v620 = vld [vmem:[#allocation5 + $0x390] sm:$0xf]
    %v621 = vld [vmem:[#allocation5 + $0x394] sm:$0xf]
    %v622 = vld [vmem:[#allocation5 + $0x398] sm:$0xf]
    %v623 = vld [vmem:[#allocation5 + $0x39c] sm:$0xf]
    %v624 = vld [vmem:[#allocation5 + $0x3a0] sm:$0xf]
    %v625 = vld [vmem:[#allocation5 + $0x3a4] sm:$0xf]
    %v626 = vld [vmem:[#allocation5 + $0x3a8] sm:$0xf]
    %v627 = vld [vmem:[#allocation5 + $0x3ac] sm:$0xf]
    %v628 = vld [vmem:[#allocation5 + $0x3b0] sm:$0xf]
    %v629 = vld [vmem:[#allocation5 + $0x3b4] sm:$0xf]
    %v630 = vld [vmem:[#allocation5 + $0x3b8] sm:$0xf]
    %v631 = vld [vmem:[#allocation5 + $0x3bc] sm:$0xf]
    %v632 = vld [vmem:[#allocation5 + $0x3c0] sm:$0xf]
    %v633 = vld [vmem:[#allocation5 + $0x3c4] sm:$0xf]
    %v634 = vld [vmem:[#allocation5 + $0x3c8] sm:$0xf]
    %v635 = vld [vmem:[#allocation5 + $0x3cc] sm:$0xf]
    %v636 = vld [vmem:[#allocation5 + $0x3d0] sm:$0xf]
    %v637 = vld [vmem:[#allocation5 + $0x3d4] sm:$0xf]
    %v638 = vld [vmem:[#allocation5 + $0x3d8] sm:$0xf]
    %v639 = vld [vmem:[#allocation5 + $0x3dc] sm:$0xf]
    %v640 = vld [vmem:[#allocation5 + $0x3e0] sm:$0xf]
    %v641 = vld [vmem:[#allocation5 + $0x3e4] sm:$0xf]
    %v642 = vld [vmem:[#allocation5 + $0x3e8] sm:$0xf]
    %v643 = vld [vmem:[#allocation5 + $0x3ec] sm:$0xf]
    %v644 = vld [vmem:[#allocation5 + $0x3f0] sm:$0xf]
    %v645 = vld [vmem:[#allocation5 + $0x3f4] sm:$0xf]
    %v646 = vld [vmem:[#allocation5 + $0x3f8] sm:$0xf]
    %v647 = vld [vmem:[#allocation5 + $0x3fc] sm:$0xf]
    %v648 = vld [vmem:[#allocation5 + $0x400] sm:$0xf]
    %v649 = vld [vmem:[#allocation5 + $0x404] sm:$0xf]
    %v650 = vld [vmem:[#allocation5 + $0x408] sm:$0xf]
    %v651 = vld [vmem:[#allocation5 + $0x40c] sm:$0xf]
    %v652 = vld [vmem:[#allocation5 + $0x410] sm:$0xf]
    %v653 = vld [vmem:[#allocation5 + $0x414] sm:$0xf]
    %v654 = vld [vmem:[#allocation5 + $0x418] sm:$0xf]
    %v655 = vld [vmem:[#allocation5 + $0x41c] sm:$0xf]
    %v656 = vld [vmem:[#allocation5 + $0x420] sm:$0xf]
    %v657 = vld [vmem:[#allocation5 + $0x424] sm:$0xf]
    %v658 = vld [vmem:[#allocation5 + $0x428] sm:$0xf]
    %v659 = vld [vmem:[#allocation5 + $0x42c] sm:$0xf]
    %v660 = vld [vmem:[#allocation5 + $0x430] sm:$0xf]
    %v661 = vld [vmem:[#allocation5 + $0x434] sm:$0xf]
    %v662 = vld [vmem:[#allocation5 + $0x438] sm:$0xf]
    %v663 = vld [vmem:[#allocation5 + $0x43c] sm:$0xf]
    %v664 = vld [vmem:[#allocation5 + $0x440] sm:$0xf]
    %v665 = vld [vmem:[#allocation5 + $0x444] sm:$0xf]
    %v666 = vld [vmem:[#allocation5 + $0x448] sm:$0xf]
    %v667 = vld [vmem:[#allocation5 + $0x44c] sm:$0xf]
    %v668 = vld [vmem:[#allocation5 + $0x450] sm:$0xf]
    %v669 = vld [vmem:[#allocation5 + $0x454] sm:$0xf]
    %v670 = vld [vmem:[#allocation5 + $0x458] sm:$0xf]
    %v671 = vld [vmem:[#allocation5 + $0x45c] sm:$0xf]
    %v672 = vld [vmem:[#allocation5 + $0x460] sm:$0xf]
    %v673 = vld [vmem:[#allocation5 + $0x464] sm:$0xf]
    %v674 = vld [vmem:[#allocation5 + $0x468] sm:$0xf]
    %v675 = vld [vmem:[#allocation5 + $0x46c] sm:$0xf]
    %v676 = vld [vmem:[#allocation5 + $0x470] sm:$0xf]
    %v677 = vld [vmem:[#allocation5 + $0x474] sm:$0xf]
    %v678 = vld [vmem:[#allocation5 + $0x478] sm:$0xf]
    %v679 = vld [vmem:[#allocation5 + $0x47c] sm:$0xf]
    %v680 = vld [vmem:[#allocation5 + $0x480] sm:$0xf]
    %v681 = vld [vmem:[#allocation5 + $0x484] sm:$0xf]
    %v682 = vld [vmem:[#allocation5 + $0x488] sm:$0xf]
    %v683 = vld [vmem:[#allocation5 + $0x48c] sm:$0xf]
    %v684 = vld [vmem:[#allocation5 + $0x490] sm:$0xf]
    %v685 = vld [vmem:[#allocation5 + $0x494] sm:$0xf]
    %v686 = vld [vmem:[%s2] sm:$0x1]
    %v688 = vperm.slane %v686, 0
    %v984 = vunpack.c.l.b16 %v392
    %v985 = vunpack.c.l.b16 %v393
    %v986 = vunpack.c.l.b16 %v394
    %v987 = vunpack.c.l.b16 %v395
    %v988 = vunpack.c.l.b16 %v396
    %v989 = vunpack.c.l.b16 %v397
    %v990 = vunpack.c.l.b16 %v398
    %v991 = vunpack.c.l.b16 %v399
    %v992 = vunpack.c.l.b16 %v400
    %v993 = vunpack.c.l.b16 %v401
    %v994 = vunpack.c.l.b16 %v402
    %v995 = vunpack.c.l.b16 %v403
    %v996 = vunpack.c.l.b16 %v404
    %v997 = vunpack.c.l.b16 %v405
    %v998 = vunpack.c.l.b16 %v406
    %v999 = vunpack.c.l.b16 %v407
    %v1000 = vunpack.c.l.b16 %v408
    %v1001 = vunpack.c.l.b16 %v409
    %v1002 = vunpack.c.l.b16 %v410
    %v1003 = vunpack.c.l.b16 %v411
    %v1004 = vunpack.c.l.b16 %v412
    %v1005 = vunpack.c.l.b16 %v413
    %v1006 = vunpack.c.l.b16 %v414
    %v1007 = vunpack.c.l.b16 %v415
    %v1008 = vunpack.c.l.b16 %v416
    %v1009 = vunpack.c.l.b16 %v417
    %v1010 = vunpack.c.l.b16 %v418
    %v1011 = vunpack.c.l.b16 %v419
    %v1012 = vunpack.c.l.b16 %v420
    %v1013 = vunpack.c.l.b16 %v421
    %v1014 = vunpack.c.l.b16 %v422
    %v1015 = vunpack.c.l.b16 %v423
    %v1016 = vunpack.c.l.b16 %v424
    %v1017 = vunpack.c.l.b16 %v425
    %v1018 = vunpack.c.l.b16 %v426
    %v1019 = vunpack.c.l.b16 %v427
    %v1020 = vunpack.c.l.b16 %v428
    %v1021 = vunpack.c.l.b16 %v429
    %v1022 = vunpack.c.l.b16 %v430
    %v1023 = vunpack.c.l.b16 %v431
    %v1024 = vunpack.c.l.b16 %v432
    %v1025 = vunpack.c.l.b16 %v433
    %v1026 = vunpack.c.l.b16 %v434
    %v1027 = vunpack.c.l.b16 %v435
    %v1028 = vunpack.c.l.b16 %v436
    %v1029 = vunpack.c.l.b16 %v437
    %v1030 = vunpack.c.l.b16 %v438
    %v1031 = vunpack.c.l.b16 %v439
    %v1032 = vunpack.c.l.b16 %v440
    %v1033 = vunpack.c.l.b16 %v441
    %v1034 = vunpack.c.l.b16 %v442
    %v1035 = vunpack.c.l.b16 %v443
    %v1036 = vunpack.c.l.b16 %v444
    %v1037 = vunpack.c.l.b16 %v445
    %v1038 = vunpack.c.l.b16 %v446
    %v1039 = vunpack.c.l.b16 %v447
    %v1040 = vunpack.c.l.b16 %v448
    %v1041 = vunpack.c.l.b16 %v449
    %v1042 = vunpack.c.l.b16 %v450
    %v1043 = vunpack.c.l.b16 %v451
    %v1044 = vunpack.c.l.b16 %v452
    %v1045 = vunpack.c.l.b16 %v453
    %v1046 = vunpack.c.l.b16 %v454
    %v1047 = vunpack.c.l.b16 %v455
    %v1048 = vunpack.c.l.b16 %v456
    %v1049 = vunpack.c.l.b16 %v457
    %v1050 = vunpack.c.l.b16 %v458
    %v1051 = vunpack.c.l.b16 %v459
    %v1052 = vunpack.c.l.b16 %v460
    %v1053 = vunpack.c.l.b16 %v461
    %v1054 = vunpack.c.l.b16 %v462
    %v1055 = vunpack.c.l.b16 %v463
    %v1056 = vunpack.c.l.b16 %v464
    %v1057 = vunpack.c.l.b16 %v465
    %v1058 = vunpack.c.l.b16 %v466
    %v1059 = vunpack.c.l.b16 %v467
    %v1060 = vunpack.c.l.b16 %v468
    %v1061 = vunpack.c.l.b16 %v469
    %v1062 = vunpack.c.l.b16 %v470
    %v1063 = vunpack.c.l.b16 %v471
    %v1064 = vunpack.c.l.b16 %v472
    %v1065 = vunpack.c.l.b16 %v473
    %v1066 = vunpack.c.l.b16 %v474
    %v1067 = vunpack.c.l.b16 %v475
    %v1068 = vunpack.c.l.b16 %v476
    %v1069 = vunpack.c.l.b16 %v477
    %v1070 = vunpack.c.l.b16 %v478
    %v1071 = vunpack.c.l.b16 %v479
    %v1072 = vunpack.c.l.b16 %v480
    %v1073 = vunpack.c.l.b16 %v481
    %v1074 = vunpack.c.l.b16 %v482
    %v1075 = vunpack.c.l.b16 %v483
    %v1076 = vunpack.c.l.b16 %v484
    %v1077 = vunpack.c.l.b16 %v485
    %v1078 = vunpack.c.l.b16 %v486
    %v1079 = vunpack.c.l.b16 %v487
    %v1080 = vunpack.c.l.b16 %v488
    %v1081 = vunpack.c.l.b16 %v489
    %v1082 = vunpack.c.l.b16 %v490
    %v1083 = vunpack.c.l.b16 %v491
    %v1084 = vunpack.c.l.b16 %v492
    %v1085 = vunpack.c.l.b16 %v493
    %v1086 = vunpack.c.l.b16 %v494
    %v1087 = vunpack.c.l.b16 %v495
    %v1088 = vunpack.c.l.b16 %v496
    %v1089 = vunpack.c.l.b16 %v497
    %v1090 = vunpack.c.l.b16 %v498
    %v1091 = vunpack.c.l.b16 %v499
    %v1092 = vunpack.c.l.b16 %v500
    %v1093 = vunpack.c.l.b16 %v501
    %v1094 = vunpack.c.l.b16 %v502
    %v1095 = vunpack.c.l.b16 %v503
    %v1096 = vunpack.c.l.b16 %v504
    %v1097 = vunpack.c.l.b16 %v505
    %v1098 = vunpack.c.l.b16 %v506
    %v1099 = vunpack.c.l.b16 %v507
    %v1100 = vunpack.c.l.b16 %v508
    %v1101 = vunpack.c.l.b16 %v509
    %v1102 = vunpack.c.l.b16 %v510
    %v1103 = vunpack.c.l.b16 %v511
    %v1104 = vunpack.c.l.b16 %v512
    %v1105 = vunpack.c.l.b16 %v513
    %v1106 = vunpack.c.l.b16 %v514
    %v1107 = vunpack.c.l.b16 %v515
    %v1108 = vunpack.c.l.b16 %v516
    %v1109 = vunpack.c.l.b16 %v517
    %v1110 = vunpack.c.l.b16 %v518
    %v1111 = vunpack.c.l.b16 %v519
    %v1112 = vunpack.c.l.b16 %v520
    %v1113 = vunpack.c.l.b16 %v521
    %v1114 = vunpack.c.l.b16 %v522
    %v1115 = vunpack.c.l.b16 %v523
    %v1116 = vunpack.c.l.b16 %v524
    %v1117 = vunpack.c.l.b16 %v525
    %v1118 = vunpack.c.l.b16 %v526
    %v1119 = vunpack.c.l.b16 %v527
    %v1120 = vunpack.c.l.b16 %v528
    %v1121 = vunpack.c.l.b16 %v529
    %v1122 = vunpack.c.l.b16 %v530
    %v1123 = vunpack.c.l.b16 %v531
    %v1124 = vunpack.c.l.b16 %v532
    %v1125 = vunpack.c.l.b16 %v533
    %v1126 = vunpack.c.l.b16 %v534
    %v1127 = vunpack.c.l.b16 %v535
    %v1128 = vunpack.c.l.b16 %v536
    %v1129 = vunpack.c.l.b16 %v537
    %v1130 = vunpack.c.l.b16 %v538
    %v1131 = vunpack.c.l.b16 %v539
    %v1132 = vunpack.c.l.b16 %v540
    %v1133 = vunpack.c.l.b16 %v541
    %v1134 = vunpack.c.l.b16 %v542
    %v1135 = vunpack.c.l.b16 %v543
    %v1136 = vunpack.c.l.b16 %v544
    %v1137 = vunpack.c.l.b16 %v545
    %v1138 = vunpack.c.l.b16 %v546
    %v1139 = vunpack.c.l.b16 %v547
    %v1140 = vunpack.c.l.b16 %v548
    %v1141 = vunpack.c.l.b16 %v549
    %v1142 = vunpack.c.l.b16 %v550
    %v1143 = vunpack.c.l.b16 %v551
    %v1144 = vunpack.c.l.b16 %v552
    %v1145 = vunpack.c.l.b16 %v553
    %v1146 = vunpack.c.l.b16 %v554
    %v1147 = vunpack.c.l.b16 %v555
    %v1148 = vunpack.c.l.b16 %v556
    %v1149 = vunpack.c.l.b16 %v557
    %v1150 = vunpack.c.l.b16 %v558
    %v1151 = vunpack.c.l.b16 %v559
    %v1152 = vunpack.c.l.b16 %v560
    %v1153 = vunpack.c.l.b16 %v561
    %v1154 = vunpack.c.l.b16 %v562
    %v1155 = vunpack.c.l.b16 %v563
    %v1156 = vunpack.c.l.b16 %v564
    %v1157 = vunpack.c.l.b16 %v565
    %v1158 = vunpack.c.l.b16 %v566
    %v1159 = vunpack.c.l.b16 %v567
    %v1160 = vunpack.c.l.b16 %v568
    %v1161 = vunpack.c.l.b16 %v569
    %v1162 = vunpack.c.l.b16 %v570
    %v1163 = vunpack.c.l.b16 %v571
    %v1164 = vunpack.c.l.b16 %v572
    %v1165 = vunpack.c.l.b16 %v573
    %v1166 = vunpack.c.l.b16 %v574
    %v1167 = vunpack.c.l.b16 %v575
    %v1168 = vunpack.c.l.b16 %v576
    %v1169 = vunpack.c.l.b16 %v577
    %v1170 = vunpack.c.l.b16 %v578
    %v1171 = vunpack.c.l.b16 %v579
    %v1172 = vunpack.c.l.b16 %v580
    %v1173 = vunpack.c.l.b16 %v581
    %v1174 = vunpack.c.l.b16 %v582
    %v1175 = vunpack.c.l.b16 %v583
    %v1176 = vunpack.c.l.b16 %v584
    %v1177 = vunpack.c.l.b16 %v585
    %v1178 = vunpack.c.l.b16 %v586
    %v1179 = vunpack.c.l.b16 %v587
    %v1180 = vunpack.c.l.b16 %v588
    %v1181 = vunpack.c.l.b16 %v589
    %v1182 = vunpack.c.l.b16 %v590
    %v1183 = vunpack.c.l.b16 %v591
    %v1184 = vunpack.c.l.b16 %v592
    %v1185 = vunpack.c.l.b16 %v593
    %v1186 = vunpack.c.l.b16 %v594
    %v1187 = vunpack.c.l.b16 %v595
    %v1188 = vunpack.c.l.b16 %v596
    %v1189 = vunpack.c.l.b16 %v597
    %v1190 = vunpack.c.l.b16 %v598
    %v1191 = vunpack.c.l.b16 %v599
    %v1192 = vunpack.c.l.b16 %v600
    %v1193 = vunpack.c.l.b16 %v601
    %v1194 = vunpack.c.l.b16 %v602
    %v1195 = vunpack.c.l.b16 %v603
    %v1196 = vunpack.c.l.b16 %v604
    %v1197 = vunpack.c.l.b16 %v605
    %v1198 = vunpack.c.l.b16 %v606
    %v1199 = vunpack.c.l.b16 %v607
    %v1200 = vunpack.c.l.b16 %v608
    %v1201 = vunpack.c.l.b16 %v609
    %v1202 = vunpack.c.l.b16 %v610
    %v1203 = vunpack.c.l.b16 %v611
    %v1204 = vunpack.c.l.b16 %v612
    %v1205 = vunpack.c.l.b16 %v613
    %v1206 = vunpack.c.l.b16 %v614
    %v1207 = vunpack.c.l.b16 %v615
    %v1208 = vunpack.c.l.b16 %v616
    %v1209 = vunpack.c.l.b16 %v617
    %v1210 = vunpack.c.l.b16 %v618
    %v1211 = vunpack.c.l.b16 %v619
    %v1212 = vunpack.c.l.b16 %v620
    %v1213 = vunpack.c.l.b16 %v621
    %v1214 = vunpack.c.l.b16 %v622
    %v1215 = vunpack.c.l.b16 %v623
    %v1216 = vunpack.c.l.b16 %v624
    %v1217 = vunpack.c.l.b16 %v625
    %v1218 = vunpack.c.l.b16 %v626
    %v1219 = vunpack.c.l.b16 %v627
    %v1220 = vunpack.c.l.b16 %v628
    %v1221 = vunpack.c.l.b16 %v629
    %v1222 = vunpack.c.l.b16 %v630
    %v1223 = vunpack.c.l.b16 %v631
    %v1224 = vunpack.c.l.b16 %v632
    %v1225 = vunpack.c.l.b16 %v633
    %v1226 = vunpack.c.l.b16 %v634
    %v1227 = vunpack.c.l.b16 %v635
    %v1228 = vunpack.c.l.b16 %v636
    %v1229 = vunpack.c.l.b16 %v637
    %v1230 = vunpack.c.l.b16 %v638
    %v1231 = vunpack.c.l.b16 %v639
    %v1232 = vunpack.c.l.b16 %v640
    %v1233 = vunpack.c.l.b16 %v641
    %v1234 = vunpack.c.l.b16 %v642
    %v1235 = vunpack.c.l.b16 %v643
    %v1236 = vunpack.c.l.b16 %v644
    %v1237 = vunpack.c.l.b16 %v645
    %v1238 = vunpack.c.l.b16 %v646
    %v1239 = vunpack.c.l.b16 %v647
    %v1240 = vunpack.c.l.b16 %v648
    %v1241 = vunpack.c.l.b16 %v649
    %v1242 = vunpack.c.l.b16 %v650
    %v1243 = vunpack.c.l.b16 %v651
    %v1244 = vunpack.c.l.b16 %v652
    %v1245 = vunpack.c.l.b16 %v653
    %v1246 = vunpack.c.l.b16 %v654
    %v1247 = vunpack.c.l.b16 %v655
    %v1248 = vunpack.c.l.b16 %v656
    %v1249 = vunpack.c.l.b16 %v657
    %v1250 = vunpack.c.l.b16 %v658
    %v1251 = vunpack.c.l.b16 %v659
    %v1252 = vunpack.c.l.b16 %v660
    %v1253 = vunpack.c.l.b16 %v661
    %v1254 = vunpack.c.l.b16 %v662
    %v1255 = vunpack.c.l.b16 %v663
    %v1256 = vunpack.c.l.b16 %v664
    %v1257 = vunpack.c.l.b16 %v665
    %v1258 = vunpack.c.l.b16 %v666
    %v1259 = vunpack.c.l.b16 %v667
    %v1260 = vunpack.c.l.b16 %v668
    %v1261 = vunpack.c.l.b16 %v669
    %v1262 = vunpack.c.l.b16 %v670
    %v1263 = vunpack.c.l.b16 %v671
    %v1264 = vunpack.c.l.b16 %v672
    %v1265 = vunpack.c.l.b16 %v673
    %v1266 = vunpack.c.l.b16 %v674
    %v1267 = vunpack.c.l.b16 %v675
    %v1268 = vunpack.c.l.b16 %v676
    %v1269 = vunpack.c.l.b16 %v677
    %v1270 = vunpack.c.l.b16 %v678
    %v1271 = vunpack.c.l.b16 %v679
    %v1272 = vunpack.c.l.b16 %v680
    %v1273 = vunpack.c.l.b16 %v681
    %v1274 = vunpack.c.l.b16 %v682
    %v1275 = vunpack.c.l.b16 %v683
    %v1276 = vunpack.c.l.b16 %v684
    %v1277 = vunpack.c.l.b16 %v685
    %v1278 = vpack.c.b16 %v985, %v984
    %v1279 = vpack.c.b16 %v987, %v986
    %v1280 = vpack.c.b16 %v989, %v988
    %v1281 = vpack.c.b16 %v991, %v990
    %v1282 = vpack.c.b16 %v993, %v992
    %v1283 = vpack.c.b16 %v995, %v994
    %v1284 = vpack.c.b16 %v997, %v996
    %v1285 = vpack.c.b16 %v999, %v998
    %v1286 = vpack.c.b16 %v1001, %v1000
    %v1287 = vpack.c.b16 %v1003, %v1002
    %v1288 = vpack.c.b16 %v1005, %v1004
    %v1289 = vpack.c.b16 %v1007, %v1006
    %v1290 = vpack.c.b16 %v1009, %v1008
    %v1291 = vpack.c.b16 %v1011, %v1010
    %v1292 = vpack.c.b16 %v1013, %v1012
    %v1293 = vpack.c.b16 %v1015, %v1014
    %v1294 = vpack.c.b16 %v1017, %v1016
    %v1295 = vpack.c.b16 %v1019, %v1018
    %v1296 = vpack.c.b16 %v1021, %v1020
    %v1297 = vpack.c.b16 %v1023, %v1022
    %v1298 = vpack.c.b16 %v1025, %v1024
    %v1299 = vpack.c.b16 %v1027, %v1026
    %v1300 = vpack.c.b16 %v1029, %v1028
    %v1301 = vpack.c.b16 %v1031, %v1030
    %v1302 = vpack.c.b16 %v1033, %v1032
    %v1303 = vpack.c.b16 %v1035, %v1034
    %v1304 = vpack.c.b16 %v1037, %v1036
    %v1305 = vpack.c.b16 %v1039, %v1038
    %v1306 = vpack.c.b16 %v1041, %v1040
    %v1307 = vpack.c.b16 %v1043, %v1042
    %v1308 = vpack.c.b16 %v1045, %v1044
    %v1309 = vpack.c.b16 %v1047, %v1046
    %v1310 = vpack.c.b16 %v1049, %v1048
    %v1311 = vpack.c.b16 %v1051, %v1050
    %v1312 = vpack.c.b16 %v1053, %v1052
    %v1313 = vpack.c.b16 %v1055, %v1054
    %v1314 = vpack.c.b16 %v1057, %v1056
    %v1315 = vpack.c.b16 %v1059, %v1058
    %v1316 = vpack.c.b16 %v1061, %v1060
    %v1317 = vpack.c.b16 %v1063, %v1062
    %v1318 = vpack.c.b16 %v1065, %v1064
    %v1319 = vpack.c.b16 %v1067, %v1066
    %v1320 = vpack.c.b16 %v1069, %v1068
    %v1321 = vpack.c.b16 %v1071, %v1070
    %v1322 = vpack.c.b16 %v1073, %v1072
    %v1323 = vpack.c.b16 %v1075, %v1074
    %v1324 = vpack.c.b16 %v1077, %v1076
    %v1325 = vpack.c.b16 %v1079, %v1078
    %v1326 = vpack.c.b16 %v1081, %v1080
    %v1327 = vpack.c.b16 %v1083, %v1082
    %v1328 = vpack.c.b16 %v1085, %v1084
    %v1329 = vpack.c.b16 %v1087, %v1086
    %v1330 = vpack.c.b16 %v1089, %v1088
    %v1331 = vpack.c.b16 %v1091, %v1090
    %v1332 = vpack.c.b16 %v1093, %v1092
    %v1333 = vpack.c.b16 %v1095, %v1094
    %v1334 = vpack.c.b16 %v1097, %v1096
    %v1335 = vpack.c.b16 %v1099, %v1098
    %v1336 = vpack.c.b16 %v1101, %v1100
    %v1337 = vpack.c.b16 %v1103, %v1102
    %v1338 = vpack.c.b16 %v1105, %v1104
    %v1339 = vpack.c.b16 %v1107, %v1106
    %v1340 = vpack.c.b16 %v1109, %v1108
    %v1341 = vpack.c.b16 %v1111, %v1110
    %v1342 = vpack.c.b16 %v1113, %v1112
    %v1343 = vpack.c.b16 %v1115, %v1114
    %v1344 = vpack.c.b16 %v1117, %v1116
    %v1345 = vpack.c.b16 %v1119, %v1118
    %v1346 = vpack.c.b16 %v1121, %v1120
    %v1347 = vpack.c.b16 %v1123, %v1122
    %v1348 = vpack.c.b16 %v1125, %v1124
    %v1349 = vpack.c.b16 %v1127, %v1126
    %v1350 = vpack.c.b16 %v1129, %v1128
    %v1351 = vpack.c.b16 %v1131, %v1130
    %v1352 = vpack.c.b16 %v1133, %v1132
    %v1353 = vpack.c.b16 %v1135, %v1134
    %v1354 = vpack.c.b16 %v1137, %v1136
    %v1355 = vpack.c.b16 %v1139, %v1138
    %v1356 = vpack.c.b16 %v1141, %v1140
    %v1357 = vpack.c.b16 %v1143, %v1142
    %v1358 = vpack.c.b16 %v1145, %v1144
    %v1359 = vpack.c.b16 %v1147, %v1146
    %v1360 = vpack.c.b16 %v1149, %v1148
    %v1361 = vpack.c.b16 %v1151, %v1150
    %v1362 = vpack.c.b16 %v1153, %v1152
    %v1363 = vpack.c.b16 %v1155, %v1154
    %v1364 = vpack.c.b16 %v1157, %v1156
    %v1365 = vpack.c.b16 %v1159, %v1158
    %v1366 = vpack.c.b16 %v1161, %v1160
    %v1367 = vpack.c.b16 %v1163, %v1162
    %v1368 = vpack.c.b16 %v1165, %v1164
    %v1369 = vpack.c.b16 %v1167, %v1166
    %v1370 = vpack.c.b16 %v1169, %v1168
    %v1371 = vpack.c.b16 %v1171, %v1170
    %v1372 = vpack.c.b16 %v1173, %v1172
    %v1373 = vpack.c.b16 %v1175, %v1174
    %v1374 = vpack.c.b16 %v1177, %v1176
    %v1375 = vpack.c.b16 %v1179, %v1178
    %v1376 = vpack.c.b16 %v1181, %v1180
    %v1377 = vpack.c.b16 %v1183, %v1182
    %v1378 = vpack.c.b16 %v1185, %v1184
    %v1379 = vpack.c.b16 %v1187, %v1186
    %v1380 = vpack.c.b16 %v1189, %v1188
    %v1381 = vpack.c.b16 %v1191, %v1190
    %v1382 = vpack.c.b16 %v1193, %v1192
    %v1383 = vpack.c.b16 %v1195, %v1194
    %v1384 = vpack.c.b16 %v1197, %v1196
    %v1385 = vpack.c.b16 %v1199, %v1198
    %v1386 = vpack.c.b16 %v1201, %v1200
    %v1387 = vpack.c.b16 %v1203, %v1202
    %v1388 = vpack.c.b16 %v1205, %v1204
    %v1389 = vpack.c.b16 %v1207, %v1206
    %v1390 = vpack.c.b16 %v1209, %v1208
    %v1391 = vpack.c.b16 %v1211, %v1210
    %v1392 = vpack.c.b16 %v1213, %v1212
    %v1393 = vpack.c.b16 %v1215, %v1214
    %v1394 = vpack.c.b16 %v1217, %v1216
    %v1395 = vpack.c.b16 %v1219, %v1218
    %v1396 = vpack.c.b16 %v1221, %v1220
    %v1397 = vpack.c.b16 %v1223, %v1222
    %v1398 = vpack.c.b16 %v1225, %v1224
    %v1399 = vpack.c.b16 %v1227, %v1226
    %v1400 = vpack.c.b16 %v1229, %v1228
    %v1401 = vpack.c.b16 %v1231, %v1230
    %v1402 = vpack.c.b16 %v1233, %v1232
    %v1403 = vpack.c.b16 %v1235, %v1234
    %v1404 = vpack.c.b16 %v1237, %v1236
    %v1405 = vpack.c.b16 %v1239, %v1238
    %v1406 = vpack.c.b16 %v1241, %v1240
    %v1407 = vpack.c.b16 %v1243, %v1242
    %v1408 = vpack.c.b16 %v1245, %v1244
    %v1409 = vpack.c.b16 %v1247, %v1246
    %v1410 = vpack.c.b16 %v1249, %v1248
    %v1411 = vpack.c.b16 %v1251, %v1250
    %v1412 = vpack.c.b16 %v1253, %v1252
    %v1413 = vpack.c.b16 %v1255, %v1254
    %v1414 = vpack.c.b16 %v1257, %v1256
    %v1415 = vpack.c.b16 %v1259, %v1258
    %v1416 = vpack.c.b16 %v1261, %v1260
    %v1417 = vpack.c.b16 %v1263, %v1262
    %v1418 = vpack.c.b16 %v1265, %v1264
    %v1419 = vpack.c.b16 %v1267, %v1266
    %v1420 = vpack.c.b16 %v1269, %v1268
    %v1421 = vpack.c.b16 %v1271, %v1270
    %v1422 = vpack.c.b16 %v1273, %v1272
    %v1423 = vpack.c.b16 %v1275, %v1274
    %v1424 = vpack.c.b16 %v1277, %v1276
    %vm1572 = vcmask 392192
    %v1574 = vsel %vm1572, %v372, 0
    %v1577 = vsel %vm1572, %v391, 0
    %1579 = vmatpush.bf16.msra.mxu0 %v1285
    %1580 = vmatpush.bf16.msra.mxu0 %v1284
    %1581 = vmatpush.bf16.msra.mxu0 %v1283
    %1582 = vmatpush.bf16.msra.mxu0 %v1282
    %1583 = vmatpush.bf16.msra.mxu0 %v1281
    %1584 = vmatpush.bf16.msra.mxu0 %v1280
    %1585 = vmatpush.bf16.msra.mxu0 %v1279
    %1586 = vmatpush.bf16.msra.mxu0 %v1278
    %1587 = vmatmul.bf16.gmra.mxu0 %v354
    %v1588 = vpop.f32.mrf.mxu0
    %v1589 = vadd.f32 %v688, %v1588
    %v1590 = vpop.f32.mrf.mxu0
    %v1591 = vadd.f32 %v688, %v1590
    %1592 = vmatmul.bf16.gmra.mxu0 %v373
    %v1593 = vpop.f32.mrf.mxu0
    %v1594 = vadd.f32 %v688, %v1593
    %v1595 = vpop.f32.mrf.mxu0
    %v1596 = vadd.f32 %v688, %v1595
    %1597 = vdwg.mxu0
    %1598 = vmatpush.bf16.msra.mxu0 %v1293
    %1599 = vmatpush.bf16.msra.mxu0 %v1292
    %1600 = vmatpush.bf16.msra.mxu0 %v1291
    %1601 = vmatpush.bf16.msra.mxu0 %v1290
    %1602 = vmatpush.bf16.msra.mxu0 %v1289
    %1603 = vmatpush.bf16.msra.mxu0 %v1288
    %1604 = vmatpush.bf16.msra.mxu0 %v1287
    %1605 = vmatpush.bf16.msra.mxu0 %v1286
    %1606 = vmatmul.bf16.gmra.mxu0 %v355
    %v1607 = vpop.f32.mrf.mxu0
    %v1608 = vadd.f32 %v1589, %v1607
    %v1609 = vpop.f32.mrf.mxu0
    %v1610 = vadd.f32 %v1591, %v1609
    %1611 = vmatmul.bf16.gmra.mxu0 %v374
    %v1612 = vpop.f32.mrf.mxu0
    %v1613 = vadd.f32 %v1594, %v1612
    %v1614 = vpop.f32.mrf.mxu0
    %v1615 = vadd.f32 %v1596, %v1614
    %1616 = vdwg.mxu0
    %1617 = vmatpush.bf16.msra.mxu0 %v1301
    %1618 = vmatpush.bf16.msra.mxu0 %v1300
    %1619 = vmatpush.bf16.msra.mxu0 %v1299
    %1620 = vmatpush.bf16.msra.mxu0 %v1298
    %1621 = vmatpush.bf16.msra.mxu0 %v1297
    %1622 = vmatpush.bf16.msra.mxu0 %v1296
    %1623 = vmatpush.bf16.msra.mxu0 %v1295
    %1624 = vmatpush.bf16.msra.mxu0 %v1294
    %1625 = vmatmul.bf16.gmra.mxu0 %v356
    %v1626 = vpop.f32.mrf.mxu0
    %v1627 = vadd.f32 %v1608, %v1626
    %v1628 = vpop.f32.mrf.mxu0
    %v1629 = vadd.f32 %v1610, %v1628
    %1630 = vmatmul.bf16.gmra.mxu0 %v375
    %v1631 = vpop.f32.mrf.mxu0
    %v1632 = vadd.f32 %v1613, %v1631
    %v1633 = vpop.f32.mrf.mxu0
    %v1634 = vadd.f32 %v1615, %v1633
    %1635 = vdwg.mxu0
    %1636 = vmatpush.bf16.msra.mxu0 %v1309
    %1637 = vmatpush.bf16.msra.mxu0 %v1308
    %1638 = vmatpush.bf16.msra.mxu0 %v1307
    %1639 = vmatpush.bf16.msra.mxu0 %v1306
    %1640 = vmatpush.bf16.msra.mxu0 %v1305
    %1641 = vmatpush.bf16.msra.mxu0 %v1304
    %1642 = vmatpush.bf16.msra.mxu0 %v1303
    %1643 = vmatpush.bf16.msra.mxu0 %v1302
    %1644 = vmatmul.bf16.gmra.mxu0 %v357
    %v1645 = vpop.f32.mrf.mxu0
    %v1646 = vadd.f32 %v1627, %v1645
    %v1647 = vpop.f32.mrf.mxu0
    %v1648 = vadd.f32 %v1629, %v1647
    %1649 = vmatmul.bf16.gmra.mxu0 %v376
    %v1650 = vpop.f32.mrf.mxu0
    %v1651 = vadd.f32 %v1632, %v1650
    %v1652 = vpop.f32.mrf.mxu0
    %v1653 = vadd.f32 %v1634, %v1652
    %1654 = vdwg.mxu0
    %1655 = vmatpush.bf16.msra.mxu0 %v1317
    %1656 = vmatpush.bf16.msra.mxu0 %v1316
    %1657 = vmatpush.bf16.msra.mxu0 %v1315
    %1658 = vmatpush.bf16.msra.mxu0 %v1314
    %1659 = vmatpush.bf16.msra.mxu0 %v1313
    %1660 = vmatpush.bf16.msra.mxu0 %v1312
    %1661 = vmatpush.bf16.msra.mxu0 %v1311
    %1662 = vmatpush.bf16.msra.mxu0 %v1310
    %1663 = vmatmul.bf16.gmra.mxu0 %v358
    %v1664 = vpop.f32.mrf.mxu0
    %v1665 = vadd.f32 %v1646, %v1664
    %v1666 = vpop.f32.mrf.mxu0
    %v1667 = vadd.f32 %v1648, %v1666
    %1668 = vmatmul.bf16.gmra.mxu0 %v377
    %v1669 = vpop.f32.mrf.mxu0
    %v1670 = vadd.f32 %v1651, %v1669
    %v1671 = vpop.f32.mrf.mxu0
    %v1672 = vadd.f32 %v1653, %v1671
    %1673 = vdwg.mxu0
    %1674 = vmatpush.bf16.msra.mxu0 %v1325
    %1675 = vmatpush.bf16.msra.mxu0 %v1324
    %1676 = vmatpush.bf16.msra.mxu0 %v1323
    %1677 = vmatpush.bf16.msra.mxu0 %v1322
    %1678 = vmatpush.bf16.msra.mxu0 %v1321
    %1679 = vmatpush.bf16.msra.mxu0 %v1320
    %1680 = vmatpush.bf16.msra.mxu0 %v1319
    %1681 = vmatpush.bf16.msra.mxu0 %v1318
    %1682 = vmatmul.bf16.gmra.mxu0 %v359
    %v1683 = vpop.f32.mrf.mxu0
    %v1684 = vadd.f32 %v1665, %v1683
    %v1685 = vpop.f32.mrf.mxu0
    %v1686 = vadd.f32 %v1667, %v1685
    %1687 = vmatmul.bf16.gmra.mxu0 %v378
    %v1688 = vpop.f32.mrf.mxu0
    %v1689 = vadd.f32 %v1670, %v1688
    %v1690 = vpop.f32.mrf.mxu0
    %v1691 = vadd.f32 %v1672, %v1690
    %1692 = vdwg.mxu0
    %1693 = vmatpush.bf16.msra.mxu0 %v1333
    %1694 = vmatpush.bf16.msra.mxu0 %v1332
    %1695 = vmatpush.bf16.msra.mxu0 %v1331
    %1696 = vmatpush.bf16.msra.mxu0 %v1330
    %1697 = vmatpush.bf16.msra.mxu0 %v1329
    %1698 = vmatpush.bf16.msra.mxu0 %v1328
    %1699 = vmatpush.bf16.msra.mxu0 %v1327
    %1700 = vmatpush.bf16.msra.mxu0 %v1326
    %1701 = vmatmul.bf16.gmra.mxu0 %v360
    %v1702 = vpop.f32.mrf.mxu0
    %v1703 = vadd.f32 %v1684, %v1702
    %v1704 = vpop.f32.mrf.mxu0
    %v1705 = vadd.f32 %v1686, %v1704
    %1706 = vmatmul.bf16.gmra.mxu0 %v379
    %v1707 = vpop.f32.mrf.mxu0
    %v1708 = vadd.f32 %v1689, %v1707
    %v1709 = vpop.f32.mrf.mxu0
    %v1710 = vadd.f32 %v1691, %v1709
    %1711 = vdwg.mxu0
    %1712 = vmatpush.bf16.msra.mxu0 %v1341
    %1713 = vmatpush.bf16.msra.mxu0 %v1340
    %1714 = vmatpush.bf16.msra.mxu0 %v1339
    %1715 = vmatpush.bf16.msra.mxu0 %v1338
    %1716 = vmatpush.bf16.msra.mxu0 %v1337
    %1717 = vmatpush.bf16.msra.mxu0 %v1336
    %1718 = vmatpush.bf16.msra.mxu0 %v1335
    %1719 = vmatpush.bf16.msra.mxu0 %v1334
    %1720 = vmatmul.bf16.gmra.mxu0 %v361
    %v1721 = vpop.f32.mrf.mxu0
    %v1722 = vadd.f32 %v1703, %v1721
    %v1723 = vpop.f32.mrf.mxu0
    %v1724 = vadd.f32 %v1705, %v1723
    %1725 = vmatmul.bf16.gmra.mxu0 %v380
    %v1726 = vpop.f32.mrf.mxu0
    %v1727 = vadd.f32 %v1708, %v1726
    %v1728 = vpop.f32.mrf.mxu0
    %v1729 = vadd.f32 %v1710, %v1728
    %1730 = vdwg.mxu0
    %1731 = vmatpush.bf16.msra.mxu0 %v1349
    %1732 = vmatpush.bf16.msra.mxu0 %v1348
    %1733 = vmatpush.bf16.msra.mxu0 %v1347
    %1734 = vmatpush.bf16.msra.mxu0 %v1346
    %1735 = vmatpush.bf16.msra.mxu0 %v1345
    %1736 = vmatpush.bf16.msra.mxu0 %v1344
    %1737 = vmatpush.bf16.msra.mxu0 %v1343
    %1738 = vmatpush.bf16.msra.mxu0 %v1342
    %1739 = vmatmul.bf16.gmra.mxu0 %v362
    %v1740 = vpop.f32.mrf.mxu0
    %v1741 = vadd.f32 %v1722, %v1740
    %v1742 = vpop.f32.mrf.mxu0
    %v1743 = vadd.f32 %v1724, %v1742
    %1744 = vmatmul.bf16.gmra.mxu0 %v381
    %v1745 = vpop.f32.mrf.mxu0
    %v1746 = vadd.f32 %v1727, %v1745
    %v1747 = vpop.f32.mrf.mxu0
    %v1748 = vadd.f32 %v1729, %v1747
    %1749 = vdwg.mxu0
    %1750 = vmatpush.bf16.msra.mxu0 %v1357
    %1751 = vmatpush.bf16.msra.mxu0 %v1356
    %1752 = vmatpush.bf16.msra.mxu0 %v1355
    %1753 = vmatpush.bf16.msra.mxu0 %v1354
    %1754 = vmatpush.bf16.msra.mxu0 %v1353
    %1755 = vmatpush.bf16.msra.mxu0 %v1352
    %1756 = vmatpush.bf16.msra.mxu0 %v1351
    %1757 = vmatpush.bf16.msra.mxu0 %v1350
    %1758 = vmatmul.bf16.gmra.mxu0 %v363
    %v1759 = vpop.f32.mrf.mxu0
    %v1760 = vadd.f32 %v1741, %v1759
    %v1761 = vpop.f32.mrf.mxu0
    %v1762 = vadd.f32 %v1743, %v1761
    %1763 = vmatmul.bf16.gmra.mxu0 %v382
    %v1764 = vpop.f32.mrf.mxu0
    %v1765 = vadd.f32 %v1746, %v1764
    %v1766 = vpop.f32.mrf.mxu0
    %v1767 = vadd.f32 %v1748, %v1766
    %1768 = vdwg.mxu0
    %1769 = vmatpush.bf16.msra.mxu0 %v1365
    %1770 = vmatpush.bf16.msra.mxu0 %v1364
    %1771 = vmatpush.bf16.msra.mxu0 %v1363
    %1772 = vmatpush.bf16.msra.mxu0 %v1362
    %1773 = vmatpush.bf16.msra.mxu0 %v1361
    %1774 = vmatpush.bf16.msra.mxu0 %v1360
    %1775 = vmatpush.bf16.msra.mxu0 %v1359
    %1776 = vmatpush.bf16.msra.mxu0 %v1358
    %1777 = vmatmul.bf16.gmra.mxu0 %v364
    %v1778 = vpop.f32.mrf.mxu0
    %v1779 = vadd.f32 %v1760, %v1778
    %v1780 = vpop.f32.mrf.mxu0
    %v1781 = vadd.f32 %v1762, %v1780
    %1782 = vmatmul.bf16.gmra.mxu0 %v383
    %v1783 = vpop.f32.mrf.mxu0
    %v1784 = vadd.f32 %v1765, %v1783
    %v1785 = vpop.f32.mrf.mxu0
    %v1786 = vadd.f32 %v1767, %v1785
    %1787 = vdwg.mxu0
    %1788 = vmatpush.bf16.msra.mxu0 %v1373
    %1789 = vmatpush.bf16.msra.mxu0 %v1372
    %1790 = vmatpush.bf16.msra.mxu0 %v1371
    %1791 = vmatpush.bf16.msra.mxu0 %v1370
    %1792 = vmatpush.bf16.msra.mxu0 %v1369
    %1793 = vmatpush.bf16.msra.mxu0 %v1368
    %1794 = vmatpush.bf16.msra.mxu0 %v1367
    %1795 = vmatpush.bf16.msra.mxu0 %v1366
    %1796 = vmatmul.bf16.gmra.mxu0 %v365
    %v1797 = vpop.f32.mrf.mxu0
    %v1798 = vadd.f32 %v1779, %v1797
    %v1799 = vpop.f32.mrf.mxu0
    %v1800 = vadd.f32 %v1781, %v1799
    %1801 = vmatmul.bf16.gmra.mxu0 %v384
    %v1802 = vpop.f32.mrf.mxu0
    %v1803 = vadd.f32 %v1784, %v1802
    %v1804 = vpop.f32.mrf.mxu0
    %v1805 = vadd.f32 %v1786, %v1804
    %1806 = vdwg.mxu0
    %1807 = vmatpush.bf16.msra.mxu0 %v1381
    %1808 = vmatpush.bf16.msra.mxu0 %v1380
    %1809 = vmatpush.bf16.msra.mxu0 %v1379
    %1810 = vmatpush.bf16.msra.mxu0 %v1378
    %1811 = vmatpush.bf16.msra.mxu0 %v1377
    %1812 = vmatpush.bf16.msra.mxu0 %v1376
    %1813 = vmatpush.bf16.msra.mxu0 %v1375
    %1814 = vmatpush.bf16.msra.mxu0 %v1374
    %1815 = vmatmul.bf16.gmra.mxu0 %v366
    %v1816 = vpop.f32.mrf.mxu0
    %v1817 = vadd.f32 %v1798, %v1816
    %v1818 = vpop.f32.mrf.mxu0
    %v1819 = vadd.f32 %v1800, %v1818
    %1820 = vmatmul.bf16.gmra.mxu0 %v385
    %v1821 = vpop.f32.mrf.mxu0
    %v1822 = vadd.f32 %v1803, %v1821
    %v1823 = vpop.f32.mrf.mxu0
    %v1824 = vadd.f32 %v1805, %v1823
    %1825 = vdwg.mxu0
    %1826 = vmatpush.bf16.msra.mxu0 %v1389
    %1827 = vmatpush.bf16.msra.mxu0 %v1388
    %1828 = vmatpush.bf16.msra.mxu0 %v1387
    %1829 = vmatpush.bf16.msra.mxu0 %v1386
    %1830 = vmatpush.bf16.msra.mxu0 %v1385
    %1831 = vmatpush.bf16.msra.mxu0 %v1384
    %1832 = vmatpush.bf16.msra.mxu0 %v1383
    %1833 = vmatpush.bf16.msra.mxu0 %v1382
    %1834 = vmatmul.bf16.gmra.mxu0 %v367
    %v1835 = vpop.f32.mrf.mxu0
    %v1836 = vadd.f32 %v1817, %v1835
    %v1837 = vpop.f32.mrf.mxu0
    %v1838 = vadd.f32 %v1819, %v1837
    %1839 = vmatmul.bf16.gmra.mxu0 %v386
    %v1840 = vpop.f32.mrf.mxu0
    %v1841 = vadd.f32 %v1822, %v1840
    %v1842 = vpop.f32.mrf.mxu0
    %v1843 = vadd.f32 %v1824, %v1842
    %1844 = vdwg.mxu0
    %1845 = vmatpush.bf16.msra.mxu0 %v1397
    %1846 = vmatpush.bf16.msra.mxu0 %v1396
    %1847 = vmatpush.bf16.msra.mxu0 %v1395
    %1848 = vmatpush.bf16.msra.mxu0 %v1394
    %1849 = vmatpush.bf16.msra.mxu0 %v1393
    %1850 = vmatpush.bf16.msra.mxu0 %v1392
    %1851 = vmatpush.bf16.msra.mxu0 %v1391
    %1852 = vmatpush.bf16.msra.mxu0 %v1390
    %1853 = vmatmul.bf16.gmra.mxu0 %v368
    %v1854 = vpop.f32.mrf.mxu0
    %v1855 = vadd.f32 %v1836, %v1854
    %v1856 = vpop.f32.mrf.mxu0
    %v1857 = vadd.f32 %v1838, %v1856
    %1858 = vmatmul.bf16.gmra.mxu0 %v387
    %v1859 = vpop.f32.mrf.mxu0
    %v1860 = vadd.f32 %v1841, %v1859
    %v1861 = vpop.f32.mrf.mxu0
    %v1862 = vadd.f32 %v1843, %v1861
    %1863 = vdwg.mxu0
    %1864 = vmatpush.bf16.msra.mxu0 %v1405
    %1865 = vmatpush.bf16.msra.mxu0 %v1404
    %1866 = vmatpush.bf16.msra.mxu0 %v1403
    %1867 = vmatpush.bf16.msra.mxu0 %v1402
    %1868 = vmatpush.bf16.msra.mxu0 %v1401
    %1869 = vmatpush.bf16.msra.mxu0 %v1400
    %1870 = vmatpush.bf16.msra.mxu0 %v1399
    %1871 = vmatpush.bf16.msra.mxu0 %v1398
    %1872 = vmatmul.bf16.gmra.mxu0 %v369
    %v1873 = vpop.f32.mrf.mxu0
    %v1874 = vadd.f32 %v1855, %v1873
    %v1875 = vpop.f32.mrf.mxu0
    %v1876 = vadd.f32 %v1857, %v1875
    %1877 = vmatmul.bf16.gmra.mxu0 %v388
    %v1878 = vpop.f32.mrf.mxu0
    %v1879 = vadd.f32 %v1860, %v1878
    %v1880 = vpop.f32.mrf.mxu0
    %v1881 = vadd.f32 %v1862, %v1880
    %1882 = vdwg.mxu0
    %1883 = vmatpush.bf16.msra.mxu0 %v1413
    %1884 = vmatpush.bf16.msra.mxu0 %v1412
    %1885 = vmatpush.bf16.msra.mxu0 %v1411
    %1886 = vmatpush.bf16.msra.mxu0 %v1410
    %1887 = vmatpush.bf16.msra.mxu0 %v1409
    %1888 = vmatpush.bf16.msra.mxu0 %v1408
    %1889 = vmatpush.bf16.msra.mxu0 %v1407
    %1890 = vmatpush.bf16.msra.mxu0 %v1406
    %1891 = vmatmul.bf16.gmra.mxu0 %v370
    %v1892 = vpop.f32.mrf.mxu0
    %v1893 = vadd.f32 %v1874, %v1892
    %v1894 = vpop.f32.mrf.mxu0
    %v1895 = vadd.f32 %v1876, %v1894
    %1896 = vmatmul.bf16.gmra.mxu0 %v389
    %v1897 = vpop.f32.mrf.mxu0
    %v1898 = vadd.f32 %v1879, %v1897
    %v1899 = vpop.f32.mrf.mxu0
    %v1900 = vadd.f32 %v1881, %v1899
    %1901 = vdwg.mxu0
    %1902 = vmatpush.bf16.msra.mxu0 %v1421
    %1903 = vmatpush.bf16.msra.mxu0 %v1420
    %1904 = vmatpush.bf16.msra.mxu0 %v1419
    %1905 = vmatpush.bf16.msra.mxu0 %v1418
    %1906 = vmatpush.bf16.msra.mxu0 %v1417
    %1907 = vmatpush.bf16.msra.mxu0 %v1416
    %1908 = vmatpush.bf16.msra.mxu0 %v1415
    %1909 = vmatpush.bf16.msra.mxu0 %v1414
    %1910 = vmatmul.bf16.gmra.mxu0 %v371
    %v1911 = vpop.f32.mrf.mxu0
    %v1912 = vadd.f32 %v1893, %v1911
    %v1913 = vpop.f32.mrf.mxu0
    %v1914 = vadd.f32 %v1895, %v1913
    %1915 = vmatmul.bf16.gmra.mxu0 %v390
    %v1916 = vpop.f32.mrf.mxu0
    %v1917 = vadd.f32 %v1898, %v1916
    %v1918 = vpop.f32.mrf.mxu0
    %v1919 = vadd.f32 %v1900, %v1918
    %1920 = vdwg.mxu0
    %1921 = vmatpush.bf16.msra.mxu0 0
    %1922 = vmatpush.bf16.msra.mxu0 0
    %1923 = vmatpush.bf16.msra.mxu0 0
    %1924 = vmatpush.bf16.msra.mxu0 0
    %1925 = vmatpush.bf16.msra.mxu0 0
    %1926 = vmatpush.bf16.msra.mxu0 %v1424
    %1927 = vmatpush.bf16.msra.mxu0 %v1423
    %1928 = vmatpush.bf16.msra.mxu0 %v1422
    %1929 = vmatmul.bf16.gmra.mxu0 %v1574
    %v1930 = vpop.f32.mrf.mxu0
    %v1931 = vadd.f32 %v1912, %v1930
    %v1932 = vpop.f32.mrf.mxu0
    %v1933 = vadd.f32 %v1914, %v1932
    %1934 = vmatmul.bf16.gmra.mxu0 %v1577
    %v1935 = vpop.f32.mrf.mxu0
    %v1936 = vadd.f32 %v1917, %v1935
    %v1937 = vpop.f32.mrf.mxu0
    %v1938 = vadd.f32 %v1919, %v1937
    %1939 = vdwg.mxu0
    %v1940 = vmax.f32 %v1931, 0.0
    %v1941 = vmax.f32 %v1933, 0.0
    %v1942 = vmax.f32 %v1936, 0.0
    %v1943 = vmax.f32 %v1938, 0.0
    %v1944 = vpack.c.bf16 %v1941, %v1940
    %v1945 = vpack.c.bf16 %v1943, %v1942
    %v1946 = vld [vmem:[#allocation7] sm:$0xf]
    %v1947 = vld [vmem:[#allocation7 + $0x4] sm:$0xf]
    %v1948 = vld [vmem:[#allocation7 + $0x8] sm:$0xf]
    %v1949 = vld [vmem:[#allocation7 + $0xc] sm:$0xf]
    %v1950 = vld [vmem:[#allocation7 + $0x10] sm:$0xf]
    %v1951 = vld [vmem:[#allocation7 + $0x14] sm:$0xf]
    %v1952 = vld [vmem:[#allocation7 + $0x18] sm:$0xf]
    %v1953 = vld [vmem:[#allocation7 + $0x1c] sm:$0xf]
    %v1954 = vld [vmem:[#allocation7 + $0x20] sm:$0xf]
    %v1955 = vld [vmem:[#allocation7 + $0x24] sm:$0xf]
    %v1956 = vld [vmem:[#allocation7 + $0x28] sm:$0xf]
    %v1957 = vld [vmem:[#allocation7 + $0x2c] sm:$0xf]
    %v1958 = vld [vmem:[#allocation7 + $0x30] sm:$0xf]
    %v1959 = vld [vmem:[#allocation7 + $0x34] sm:$0xf]
    %v1960 = vld [vmem:[#allocation7 + $0x38] sm:$0xf]
    %v1961 = vld [vmem:[#allocation7 + $0x3c] sm:$0xf]
    %v1962 = vld [vmem:[%s4] sm:$0x1]
    %v1964 = vperm.slane %v1962, 0
    %v1982 = vunpack.c.l.b16 %v1946
    %v1983 = vunpack.c.l.b16 %v1947
    %v1984 = vunpack.c.l.b16 %v1948
    %v1985 = vunpack.c.l.b16 %v1949
    %v1986 = vunpack.c.l.b16 %v1950
    %v1987 = vunpack.c.l.b16 %v1951
    %v1988 = vunpack.c.l.b16 %v1952
    %v1989 = vunpack.c.l.b16 %v1953
    %v1990 = vunpack.c.l.b16 %v1954
    %v1991 = vunpack.c.l.b16 %v1955
    %v1992 = vunpack.c.l.b16 %v1956
    %v1993 = vunpack.c.l.b16 %v1957
    %v1994 = vunpack.c.l.b16 %v1958
    %v1995 = vunpack.c.l.b16 %v1959
    %v1996 = vunpack.c.l.b16 %v1960
    %v1997 = vunpack.c.l.b16 %v1961
    %v1998 = vpack.c.b16 %v1983, %v1982
    %v1999 = vpack.c.b16 %v1985, %v1984
    %v2000 = vpack.c.b16 %v1987, %v1986
    %v2001 = vpack.c.b16 %v1989, %v1988
    %v2002 = vpack.c.b16 %v1991, %v1990
    %v2003 = vpack.c.b16 %v1993, %v1992
    %v2004 = vpack.c.b16 %v1995, %v1994
    %v2005 = vpack.c.b16 %v1997, %v1996
    %2014 = vmatpush.bf16.msra.mxu0 %v2005
    %2015 = vmatpush.bf16.msra.mxu0 %v2004
    %2016 = vmatpush.bf16.msra.mxu0 %v2003
    %2017 = vmatpush.bf16.msra.mxu0 %v2002
    %2018 = vmatpush.bf16.msra.mxu0 %v2001
    %2019 = vmatpush.bf16.msra.mxu0 %v2000
    %2020 = vmatpush.bf16.msra.mxu0 %v1999
    %2021 = vmatpush.bf16.msra.mxu0 %v1998
    %2022 = vmatmul.bf16.gmra.mxu0 %v1944
    %v2023 = vpop.f32.mrf.mxu0
    %v2024 = vadd.f32 %v1964, %v2023
    %v2025 = vpop.f32.mrf.mxu0
    %v2026 = vadd.f32 %v1964, %v2025
    %2027 = vmatmul.bf16.gmra.mxu0 %v1945
    %v2028 = vpop.f32.mrf.mxu0
    %v2029 = vadd.f32 %v1964, %v2028
    %v2030 = vpop.f32.mrf.mxu0
    %v2031 = vadd.f32 %v1964, %v2030
    %2032 = vdwg.mxu0
    %v2033 = vmax.f32 %v2024, 0.0
    %v2034 = vmax.f32 %v2026, 0.0
    %v2035 = vmax.f32 %v2029, 0.0
    %v2036 = vmax.f32 %v2031, 0.0
    %v2037 = vpack.c.bf16 %v2034, %v2033
    %v2038 = vpack.c.bf16 %v2036, %v2035
    %v2039 = vld [vmem:[#allocation8] sm:$0xf]
    %v2040 = vld [vmem:[#allocation8 + $0x4] sm:$0xf]
    %v2041 = vld [vmem:[#allocation8 + $0x8] sm:$0xf]
    %v2042 = vld [vmem:[#allocation8 + $0xc] sm:$0xf]
    %v2043 = vld [vmem:[#allocation8 + $0x10] sm:$0xf]
    %v2044 = vld [vmem:[#allocation8 + $0x14] sm:$0xf]
    %v2045 = vld [vmem:[#allocation8 + $0x18] sm:$0xf]
    %v2046 = vld [vmem:[#allocation8 + $0x1c] sm:$0xf]
    %v2047 = vld [vmem:[#allocation8 + $0x20] sm:$0xf]
    %v2048 = vld [vmem:[#allocation8 + $0x24] sm:$0xf]
    %v2049 = vld [vmem:[#allocation8 + $0x28] sm:$0xf]
    %v2050 = vld [vmem:[#allocation8 + $0x2c] sm:$0xf]
    %v2051 = vld [vmem:[#allocation8 + $0x30] sm:$0xf]
    %v2052 = vld [vmem:[#allocation8 + $0x34] sm:$0xf]
    %v2053 = vld [vmem:[#allocation8 + $0x38] sm:$0xf]
    %v2054 = vld [vmem:[#allocation8 + $0x3c] sm:$0xf]
    %v2055 = vld [vmem:[%s6] sm:$0x1]
    %v2057 = vperm.slane %v2055, 0
    %v2075 = vunpack.c.l.b16 %v2039
    %v2076 = vunpack.c.l.b16 %v2040
    %v2077 = vunpack.c.l.b16 %v2041
    %v2078 = vunpack.c.l.b16 %v2042
    %v2079 = vunpack.c.l.b16 %v2043
    %v2080 = vunpack.c.l.b16 %v2044
    %v2081 = vunpack.c.l.b16 %v2045
    %v2082 = vunpack.c.l.b16 %v2046
    %v2083 = vunpack.c.l.b16 %v2047
    %v2084 = vunpack.c.l.b16 %v2048
    %v2085 = vunpack.c.l.b16 %v2049
    %v2086 = vunpack.c.l.b16 %v2050
    %v2087 = vunpack.c.l.b16 %v2051
    %v2088 = vunpack.c.l.b16 %v2052
    %v2089 = vunpack.c.l.b16 %v2053
    %v2090 = vunpack.c.l.b16 %v2054
    %v2091 = vpack.c.b16 %v2076, %v2075
    %v2092 = vpack.c.b16 %v2078, %v2077
    %v2093 = vpack.c.b16 %v2080, %v2079
    %v2094 = vpack.c.b16 %v2082, %v2081
    %v2095 = vpack.c.b16 %v2084, %v2083
    %v2096 = vpack.c.b16 %v2086, %v2085
    %v2097 = vpack.c.b16 %v2088, %v2087
    %v2098 = vpack.c.b16 %v2090, %v2089
    %2107 = vmatpush.bf16.msra.mxu0 %v2098
    %2108 = vmatpush.bf16.msra.mxu0 %v2097
    %2109 = vmatpush.bf16.msra.mxu0 %v2096
    %2110 = vmatpush.bf16.msra.mxu0 %v2095
    %2111 = vmatpush.bf16.msra.mxu0 %v2094
    %2112 = vmatpush.bf16.msra.mxu0 %v2093
    %2113 = vmatpush.bf16.msra.mxu0 %v2092
    %2114 = vmatpush.bf16.msra.mxu0 %v2091
    %2115 = vmatmul.bf16.gmra.mxu0 %v2037
    %v2116 = vpop.f32.mrf.mxu0
    %v2117 = vadd.f32 %v2057, %v2116
    %v2118 = vpop.f32.mrf.mxu0
    %v2119 = vadd.f32 %v2057, %v2118
    %2120 = vmatmul.bf16.gmra.mxu0 %v2038
    %v2121 = vpop.f32.mrf.mxu0
    %v2122 = vadd.f32 %v2057, %v2121
    %v2123 = vpop.f32.mrf.mxu0
    %v2124 = vadd.f32 %v2057, %v2123
    %2125 = vdwg.mxu0
    %v2126 = vmax.f32 %v2117, 0.0
    %v2127 = vmax.f32 %v2119, 0.0
    %v2128 = vmax.f32 %v2122, 0.0
    %v2129 = vmax.f32 %v2124, 0.0
    %v2130 = vpack.c.bf16 %v2127, %v2126
    %v2131 = vpack.c.bf16 %v2129, %v2128
    %v2132 = vld [vmem:[#allocation10] sm:$0xf]
    %v2133 = vld [vmem:[#allocation10 + $0x4] sm:$0xf]
    %v2134 = vld [vmem:[#allocation10 + $0x8] sm:$0xf]
    %v2135 = vld [vmem:[#allocation10 + $0xc] sm:$0xf]
    %v2136 = vld [vmem:[#allocation10 + $0x10] sm:$0xf]
    %v2137 = vld [vmem:[#allocation10 + $0x14] sm:$0xf]
    %v2138 = vld [vmem:[#allocation10 + $0x18] sm:$0xf]
    %v2139 = vld [vmem:[#allocation10 + $0x1c] sm:$0xf]
    %v2140 = vld [vmem:[#allocation10 + $0x20] sm:$0xf]
    %v2141 = vld [vmem:[#allocation10 + $0x24] sm:$0xf]
    %v2142 = vld [vmem:[#allocation10 + $0x28] sm:$0xf]
    %v2143 = vld [vmem:[#allocation10 + $0x2c] sm:$0xf]
    %v2144 = vld [vmem:[#allocation10 + $0x30] sm:$0xf]
    %v2145 = vld [vmem:[#allocation10 + $0x34] sm:$0xf]
    %v2146 = vld [vmem:[#allocation10 + $0x38] sm:$0xf]
    %v2147 = vld [vmem:[#allocation10 + $0x3c] sm:$0xf]
    %v2164 = vunpack.c.l.b16 %v2132
    %v2165 = vunpack.c.l.b16 %v2133
    %v2166 = vunpack.c.l.b16 %v2134
    %v2167 = vunpack.c.l.b16 %v2135
    %v2168 = vunpack.c.l.b16 %v2136
    %v2169 = vunpack.c.l.b16 %v2137
    %v2170 = vunpack.c.l.b16 %v2138
    %v2171 = vunpack.c.l.b16 %v2139
    %v2172 = vunpack.c.l.b16 %v2140
    %v2173 = vunpack.c.l.b16 %v2141
    %v2174 = vunpack.c.l.b16 %v2142
    %v2175 = vunpack.c.l.b16 %v2143
    %v2176 = vunpack.c.l.b16 %v2144
    %v2177 = vunpack.c.l.b16 %v2145
    %v2178 = vunpack.c.l.b16 %v2146
    %v2179 = vunpack.c.l.b16 %v2147
    %v2180 = vpack.c.b16 %v2165, %v2164
    %v2181 = vpack.c.b16 %v2167, %v2166
    %v2182 = vpack.c.b16 %v2169, %v2168
    %v2183 = vpack.c.b16 %v2171, %v2170
    %v2184 = vpack.c.b16 %v2173, %v2172
    %v2185 = vpack.c.b16 %v2175, %v2174
    %v2186 = vpack.c.b16 %v2177, %v2176
    %v2187 = vpack.c.b16 %v2179, %v2178
    %2196 = vmatpush.bf16.msra.mxu0 %v2187
    %2197 = vmatpush.bf16.msra.mxu0 %v2186
    %2198 = vmatpush.bf16.msra.mxu0 %v2185
    %2199 = vmatpush.bf16.msra.mxu0 %v2184
    %2200 = vmatpush.bf16.msra.mxu0 %v2183
    %2201 = vmatpush.bf16.msra.mxu0 %v2182
    %2202 = vmatpush.bf16.msra.mxu0 %v2181
    %2203 = vmatpush.bf16.msra.mxu0 %v2180
    %2204 = vmatmul.bf16.gmra.mxu0 %v2130
    %v2205 = vpop.f32.mrf.mxu0
    %v2206 = vadd.f32 0.0, %v2205
    %v2207 = vpop.f32.mrf.mxu0
    %v2208 = vadd.f32 0.0, %v2207
    %2209 = vmatmul.bf16.gmra.mxu0 %v2131
    %v2210 = vpop.f32.mrf.mxu0
    %v2211 = vadd.f32 0.0, %v2210
    %v2212 = vpop.f32.mrf.mxu0
    %v2213 = vadd.f32 0.0, %v2212
    %2214 = vdwg.mxu0
    %v2215 = vpack.c.bf16 %v2206, %v2206
    %v2216 = vpack.c.bf16 %v2208, %v2208
    %v2217 = vpack.c.bf16 %v2211, %v2211
    %v2218 = vpack.c.bf16 %v2213, %v2213
    %2219 = vst [vmem:[#allocation11] sm:$0xf] %v2215
    %2220 = vst [vmem:[#allocation11 + $0x4] sm:$0xf] %v2216
    %2221 = vst [vmem:[#allocation11 + $0x8] sm:$0xf] %v2217
    %2222 = vst [vmem:[#allocation11 + $0xc] sm:$0xf] %v2218
    // Predicated region
    $region54: #{tpu_custom_call.1} parent=1 // pred_check
      _
    $region55: #{tpu_custom_call.1} parent=1 // pred_check_branch
      %2224 = sbr.rel (0) target = $region57
    $region56: #{tpu_custom_call.1} parent=1 // pred_region
      %2226 = vsyncadd [#allocation4], 0
      %s2227 = sshll.u32 [#allocation11], 4
      %s2228 = int_to_ptr.vmem [resolvable:$true] %s2227
      %s2229 = sshll.u32 %s8, 4
      %s2230 = int_to_ptr.hbm [resolvable:$true] %s2229
      %2235 = dma.vmem_to_hbm [thread:$0]  %s2228, 256, %s2230, [#allocation4], 64, 64, 4
    $region57: #{tpu_custom_call.1} parent=1 // pred_fallthru
      _
    // Predicated region
    $region58: #{tpu_custom_call.1} parent=1 // pred_check
      _
    $region59: #{tpu_custom_call.1} parent=1 // pred_check_branch
      %2237 = sbr.rel (0) target = $region61
    $region60: #{tpu_custom_call.1} parent=1 // pred_region
      %2239 = dma.done [#allocation4], 256
    $region61: #{tpu_custom_call.1} parent=1 // pred_fallthru
      _
    %2240 = vsyncpa [#allocation3], 1
    %2241 = vsyncpa [#allocation6], 1
    %2242 = vsyncpa [#allocation9], 1
    %2243 = vsyncpa [#allocation4], 1

</llo_original>
